<compile_context>
chip_gen: v7x
topology: tpu7x:2x2x1
jax: 0.10.0
libtpu: 0.0.40
codegen_flags: <defaults>
</compile_context>

<pallas_src>
import functools

import numpy as np

import jax
import jax.numpy as jnp
from jax import lax
from jax.experimental import pallas as pl
from jax.experimental.pallas import tpu as pltpu


# ---------------------------------------------------------------------------
# In-kernel helpers shared by both passes.
# ---------------------------------------------------------------------------
def _load_rows_f32(x_ref, xf_ref, row_in0):
    """Cast the input rows needed by this output-row tile (bf16 in HBM/VMEM)
    into a small f32 VMEM scratch, <= 8 rows per statement to bound live
    vregs.  All window slicing below then happens on f32 with static offsets,
    the exact code path the previous all-f32 kernel already proved."""
    rin = xf_ref.shape[0]
    for h0 in range(0, rin, 8):
        hlen = min(8, rin - h0)
        xf_ref[h0:h0 + hlen] = (
            x_ref[0, pl.ds(row_in0 + h0, hlen)].astype(jnp.float32))


def _conv_tile(xf_ref, w_ref, pack_ref, *, kh, kw, th, ow, stride, c):
    """Conv for one (image, row-tile) step.

    Packs the KH*KW shifted windows into the (TH*OW, KH*KW*C) f32 VMEM
    scratch and contracts them with the flattened weights in ONE MXU matmul
    (K = KH*KW*C) instead of KH*KW tiny K=C dots.  The transposed-RHS
    dot_general produces the tile directly in channel-major (OC, TH*OW) form,
    so HBM stores are lane-dense and the final NCHW view is a free reshape.
    """
    thw = th * ow
    for i in range(kh):                       # static taps, unrolled
        for j in range(kw):
            tap = i * kw + j
            if stride == 1:
                win = xf_ref[i:i + th, j:j + ow, :]          # (TH, OW, C)
            else:
                # TODO(synk): stride > 1 path is not exercised by the demo
                # shapes; verify the doubly-strided pl.ds before relying on it.
                win = xf_ref[pl.ds(i, th, stride=stride),
                             pl.ds(j, ow, stride=stride), :]
            pack_ref[:, tap * c:(tap + 1) * c] = win.reshape(thw, c)
    # (OC, K) x (TH*OW, K) contracted over K -> (OC, TH*OW), f32 accumulate.
    return lax.dot_general(
        w_ref[...].astype(jnp.float32), pack_ref[...],
        dimension_numbers=(((1,), (1,)), ((), ())),
        preferred_element_type=jnp.float32)


# ---------------------------------------------------------------------------
# Pass 1: partial BN statistics only (no activation write).
# ---------------------------------------------------------------------------
def _stats_kernel(x_ref, w_ref, stats_ref, xf_ref, pack_ref, *,
                  kh, kw, th, ow, stride, c):
    _load_rows_f32(x_ref, xf_ref, pl.program_id(1) * (th * stride))
    acc = _conv_tile(xf_ref, w_ref, pack_ref,
                     kh=kh, kw=kw, th=th, ow=ow, stride=stride, c=c)
    # NOTE: conv bias intentionally omitted -- under training-mode BatchNorm it
    # shifts y and the batch mean identically and cancels exactly.
    m = float(th * ow)
    s = jnp.sum(acc, axis=1, keepdims=True)                   # (OC, 1)
    d = acc - s * (1.0 / m)
    css = jnp.sum(d * d, axis=1, keepdims=True)               # centered SS
    # Both statistics go into one packed output block (single double-buffered
    # output instead of two 1-lane-wide ones).
    # TODO(synk): on v5e, if the stats pass ever becomes the binding VALU slot
    # at larger tiles, fold the sum into the matmul epilogue.
    stats_ref[0, 0, :, 0:1] = s
    stats_ref[0, 0, :, 1:2] = css


# ---------------------------------------------------------------------------
# Pass 2: recompute the (cheap) conv tile and apply the BN affine; the
# activation is written to HBM exactly once, already NCHW-contiguous.
# ---------------------------------------------------------------------------
def _conv_affine_kernel(x_ref, w_ref, ss_ref, y_ref, xf_ref, pack_ref, *,
                        kh, kw, th, ow, stride, c):
    _load_rows_f32(x_ref, xf_ref, pl.program_id(1) * (th * stride))
    acc = _conv_tile(xf_ref, w_ref, pack_ref,
                     kh=kh, kw=kw, th=th, ow=ow, stride=stride, c=c)
    y_ref[...] = (acc * ss_ref[0] + ss_ref[1])[None]          # (1, OC, TH*OW)


# ---------------------------------------------------------------------------
# Tiling / VMEM helpers.
# ---------------------------------------------------------------------------
def _pick_row_tile(oh, ow, n):
    """Pick the output-row tile TH: flattened width TH*OW must be a multiple
    of 128 lanes (unmasked stores); among those, use the largest TH that still
    yields >= 8 grid steps, otherwise the smallest lane-dense divisor (most
    steps).  Falls back to the full image if no lane-dense divisor exists."""
    best = oh
    for th in range(oh, 0, -1):
        if oh % th or (th * ow) % 128:
            continue
        best = th
        if n * (oh // th) >= 8:
            break
    return best


def _round_up(v, m):
    return -(-v // m) * m


def _padded_bytes(shape, dtype):
    itemsize = np.dtype(dtype).itemsize
    dims = list(shape)
    if len(dims) >= 1:
        dims[-1] = _round_up(dims[-1], 128)
    if len(dims) >= 2:
        dims[-2] = _round_up(dims[-2], 32 // itemsize)   # 8 f32 / 16 bf16
    nbytes = itemsize
    for d in dims:
        nbytes *= d
    return nbytes


def _vmem_limit(dbuf, single=(), headroom=4 * 1024 * 1024):
    total = 2 * sum(_padded_bytes(s, d) for s, d in dbuf)      # double-buffered
    total += sum(_padded_bytes(s, d) for s, d in single)       # scratch
    # Cap well below v7x's 64 MiB/TensorCore physical VMEM.
    return int(min(40 * 1024 * 1024, total + headroom))


# ---------------------------------------------------------------------------
# Wrapper: NCHW in -> NCHW out, training-mode BatchNorm semantics.
# ---------------------------------------------------------------------------
def conv2d_batchnorm(x, conv_w, conv_b, gamma, beta, *, stride=1, padding=0,
                     eps=1e-5, input_dtype=jnp.bfloat16):
    del conv_b  # exact no-op under training-mode BN (see kernel note)

    n, c, h, w = x.shape
    oc, _, kh, kw = conv_w.shape
    oh = (h + 2 * padding - kh) // stride + 1
    ow = (w + 2 * padding - kw) // stride + 1
    hp, wp = h + 2 * padding, w + 2 * padding
    kc = kh * kw * c

    th = _pick_row_tile(oh, ow, n)
    nrt = oh // th
    thw = th * ow
    rin = (th - 1) * stride + kh            # input rows needed per row tile

    # Small one-time input relayouts; bf16 staging halves pass-1 HBM traffic.
    # (Set input_dtype=jnp.float32 for exact f32 module numerics.)
    x_pad = jnp.pad(jnp.transpose(x, (0, 2, 3, 1)),
                    ((0, 0), (padding, padding), (padding, padding), (0, 0))
                    ).astype(input_dtype)                       # (N,HP,WP,C)
    w_flat = jnp.transpose(conv_w, (0, 2, 3, 1)).reshape(oc, kc).astype(
        input_dtype)                                            # (OC,KH*KW*C)

    grid = (n, nrt)
    x_spec = pl.BlockSpec((1, hp, wp, c), lambda i, r: (i, 0, 0, 0))
    w_spec = pl.BlockSpec((oc, kc), lambda i, r: (0, 0))
    sem = ("parallel", "parallel")
    kparams = dict(kh=kh, kw=kw, th=th, ow=ow, stride=stride, c=c)
    scratch_specs = lambda: [pltpu.VMEM((rin, wp, c), jnp.float32),
                             pltpu.VMEM((thw, kc), jnp.float32)]

    # ---- Pass 1: per-(image, row-tile) partial statistics. ----
    vmem1 = _vmem_limit(
        dbuf=[((1, hp, wp, c), input_dtype), ((oc, kc), input_dtype),
              ((1, 1, oc, 2), jnp.float32)],
        single=[((rin, wp, c), jnp.float32), ((thw, kc), jnp.float32)])

    stats = pl.pallas_call(
        functools.partial(_stats_kernel, **kparams),
        out_shape=jax.ShapeDtypeStruct((n, nrt, oc, 2), jnp.float32),
        grid_spec=pltpu.PrefetchScalarGridSpec(
            num_scalar_prefetch=0, grid=grid,
            in_specs=[x_spec, w_spec],
            out_specs=pl.BlockSpec((1, 1, oc, 2), lambda i, r: (i, r, 0, 0)),
            scratch_shapes=scratch_specs()),
        compiler_params=pltpu.CompilerParams(
            dimension_semantics=sem, vmem_limit_bytes=vmem1),
    )(x_pad, w_flat)

    # ---- Scalar glue: Chan parallel-variance combination of the partials.
    # Every partial covers exactly th*ow elements, so uniform weights hold. ----
    m_tile = float(thw)
    total = float(n * oh * ow)
    s_t = stats[..., 0]                                      # (N, NRT, OC)
    css_t = stats[..., 1]
    mean = jnp.sum(s_t, axis=(0, 1)) / total                 # (OC,)
    mu_t = s_t / m_tile
    var = (jnp.sum(css_t, axis=(0, 1))
           + m_tile * jnp.sum((mu_t - mean) ** 2, axis=(0, 1))) / total
    scale = gamma / jnp.sqrt(var + eps)                      # (OC,)
    shift = beta - mean * scale
    scale_shift = jnp.stack([scale, shift], axis=0).reshape(2, oc, 1).astype(
        jnp.float32)

    # ---- Pass 2: recompute conv + BN affine; single activation write. ----
    vmem2 = _vmem_limit(
        dbuf=[((1, hp, wp, c), input_dtype), ((oc, kc), input_dtype),
              ((2, oc, 1), jnp.float32), ((1, oc, thw), jnp.float32)],
        single=[((rin, wp, c), jnp.float32), ((thw, kc), jnp.float32)])

    y = pl.pallas_call(
        functools.partial(_conv_affine_kernel, **kparams),
        out_shape=jax.ShapeDtypeStruct((n, oc, oh * ow), jnp.float32),
        grid_spec=pltpu.PrefetchScalarGridSpec(
            num_scalar_prefetch=0, grid=grid,
            in_specs=[x_spec, w_spec,
                      pl.BlockSpec((2, oc, 1), lambda i, r: (0, 0, 0))],
            out_specs=pl.BlockSpec((1, oc, thw), lambda i, r: (i, 0, r)),
            scratch_shapes=scratch_specs()),
        compiler_params=pltpu.CompilerParams(
            dimension_semantics=sem, vmem_limit_bytes=vmem2),
    )(x_pad, w_flat, scale_shift)

    # (N, OC, OH*OW) is NCHW-contiguous: this reshape is free.
    return y.reshape(n, oc, oh, ow)


# ---------------------------------------------------------------------------
# Pure-JAX reference for the correctness check.
# ---------------------------------------------------------------------------
def _reference(x, conv_w, conv_b, gamma, beta, *, stride, padding, eps=1e-5):
    y = lax.conv_general_dilated(
        x, conv_w, window_strides=(stride, stride),
        padding=((padding, padding), (padding, padding)),
        dimension_numbers=("NCHW", "OIHW", "NCHW"))
    y = y + conv_b.reshape(1, -1, 1, 1)
    mean = jnp.mean(y, axis=(0, 2, 3), keepdims=True)
    var = jnp.mean((y - mean) ** 2, axis=(0, 2, 3), keepdims=True)
    return (y - mean) / jnp.sqrt(var + eps) * gamma.reshape(1, -1, 1, 1) \
        + beta.reshape(1, -1, 1, 1)


if __name__ == "__main__":
    # Module config: Conv2dBatchNorm(in_channels=4, out_channels=8,
    #                                kernel_size=3, stride=1, padding=1)
    N, C, H, W = 2, 4, 16, 16
    OC, KH, KW = 8, 3, 3
    STRIDE, PAD = 1, 1

    key = jax.random.PRNGKey(0)
    kx, kw_, kb = jax.random.split(key, 3)

    x = jax.random.normal(kx, (N, C, H, W), dtype=jnp.float32)
    fan_in = C * KH * KW
    bound = 1.0 / (fan_in ** 0.5)
    conv_w = jax.random.uniform(kw_, (OC, C, KH, KW), jnp.float32, -bound, bound)
    conv_b = jax.random.uniform(kb, (OC,), jnp.float32, -bound, bound)
    gamma = jnp.ones((OC,), jnp.float32)    # BatchNorm2d default weight
    beta = jnp.zeros((OC,), jnp.float32)    # BatchNorm2d default bias

    fwd = jax.jit(functools.partial(conv2d_batchnorm, stride=STRIDE, padding=PAD))
    out = jax.block_until_ready(fwd(x, conv_w, conv_b, gamma, beta))
    assert out.shape == (N, OC, H, W)

    # Kernel-math check: the kernel stages x / weights through bf16, so compare
    # against an f32 reference fed the SAME bf16-rounded inputs (bf16 products
    # are exact in f32) -> tight tolerance.
    xq = x.astype(jnp.bfloat16).astype(jnp.float32)
    wq = conv_w.astype(jnp.bfloat16).astype(jnp.float32)
    ref_q = _reference(xq, wq, conv_b, gamma, beta, stride=STRIDE, padding=PAD)
    assert jnp.allclose(out, ref_q, atol=2e-4, rtol=2e-4), \
        float(jnp.max(jnp.abs(out - ref_q)))

    # Module-semantics check against the full-f32 reference: only the
    # deliberate bf16 input staging separates them.
    ref = _reference(x, conv_w, conv_b, gamma, beta, stride=STRIDE, padding=PAD)
    assert jnp.allclose(out, ref, atol=3e-2, rtol=3e-2), \
        float(jnp.max(jnp.abs(out - ref)))

    print("KERNEL_OK")
</pallas_src>

<mosaic_0001>
module attributes {stable_mosaic.version = 11 : i64} {
  func.func @_stats_kernel(%arg0: i32, %arg1: i32, %arg2: memref<1x18x18x4xbf16, #tpu.memory_space<vmem>>, %arg3: memref<8x36xbf16, #tpu.memory_space<vmem>>, %arg4: memref<1x1x8x2xf32, #tpu.memory_space<vmem>>, %arg5: memref<10x18x4xf32, #tpu.memory_space<vmem>>, %arg6: memref<128x36xf32, #tpu.memory_space<vmem>>) attributes {dimension_semantics = [#tpu.dimension_semantics<parallel>, #tpu.dimension_semantics<parallel>], iteration_bounds = array<i64: 2, 2>, scalar_prefetch = 0 : i64, scratch_operands = 2 : i64, tpu.core_type = #tpu.core_type<tc>, window_params = [{transform_indices = @transform_0, window_bounds = array<i64: 1, 18, 18, 4>}, {pipeline_mode = #tpu.pipeline_mode<synchronous>, transform_indices = @transform_1, window_bounds = array<i64: 8, 36>}, {transform_indices = @transform_2, window_bounds = array<i64: 1, 1, 8, 2>}]} {
    %c8_i32 = arith.constant 8 : i32
    %0 = arith.muli %arg1, %c8_i32 : i32
    %c0_i32 = arith.constant 0 : i32
    %1 = arith.addi %0, %c0_i32 : i32
    %c0 = arith.constant 0 : index
    %2 = arith.index_cast %1 : i32 to index
    %c0_0 = arith.constant 0 : index
    %c0_1 = arith.constant 0 : index
    %3 = vector.load %arg2[%c0, %2, %c0_0, %c0_1] : memref<1x18x18x4xbf16, #tpu.memory_space<vmem>>, vector<1x8x18x4xbf16>
    %4 = vector.shape_cast %3 : vector<1x8x18x4xbf16> to vector<8x18x4xbf16>
    %5 = arith.extf %4 : vector<8x18x4xbf16> to vector<8x18x4xf32>
    %c0_2 = arith.constant 0 : index
    %c0_3 = arith.constant 0 : index
    %c0_4 = arith.constant 0 : index
    %6 = vector.load %arg5[%c0_2, %c0_3, %c0_4] : memref<10x18x4xf32, #tpu.memory_space<vmem>>, vector<8x18x4xf32>
    tpu.vector_store %arg5[%c0_2, %c0_3, %c0_4], %5 {strides = array<i32>} : memref<10x18x4xf32, #tpu.memory_space<vmem>>, vector<8x18x4xf32>,
    %c8_i32_5 = arith.constant 8 : i32
    %7 = arith.addi %0, %c8_i32_5 : i32
    %c0_6 = arith.constant 0 : index
    %8 = arith.index_cast %7 : i32 to index
    %c0_7 = arith.constant 0 : index
    %c0_8 = arith.constant 0 : index
    %9 = vector.load %arg2[%c0_6, %8, %c0_7, %c0_8] : memref<1x18x18x4xbf16, #tpu.memory_space<vmem>>, vector<1x2x18x4xbf16>
    %10 = vector.shape_cast %9 : vector<1x2x18x4xbf16> to vector<2x18x4xbf16>
    %11 = arith.extf %10 : vector<2x18x4xbf16> to vector<2x18x4xf32>
    %c8 = arith.constant 8 : index
    %c0_9 = arith.constant 0 : index
    %c0_10 = arith.constant 0 : index
    %12 = vector.load %arg5[%c8, %c0_9, %c0_10] : memref<10x18x4xf32, #tpu.memory_space<vmem>>, vector<2x18x4xf32>
    tpu.vector_store %arg5[%c8, %c0_9, %c0_10], %11 {strides = array<i32>} : memref<10x18x4xf32, #tpu.memory_space<vmem>>, vector<2x18x4xf32>,
    %c0_11 = arith.constant 0 : index
    %c0_12 = arith.constant 0 : index
    %c0_13 = arith.constant 0 : index
    %13 = vector.load %arg5[%c0_11, %c0_12, %c0_13] : memref<10x18x4xf32, #tpu.memory_space<vmem>>, vector<8x16x4xf32>
    %14 = vector.shape_cast %13 : vector<8x16x4xf32> to vector<128x4xf32>
    %c0_14 = arith.constant 0 : index
    %c0_15 = arith.constant 0 : index
    %15 = vector.load %arg6[%c0_14, %c0_15] : memref<128x36xf32, #tpu.memory_space<vmem>>, vector<128x4xf32>
    tpu.vector_store %arg6[%c0_14, %c0_15], %14 {strides = array<i32>} : memref<128x36xf32, #tpu.memory_space<vmem>>, vector<128x4xf32>,
    %c0_16 = arith.constant 0 : index
    %c1 = arith.constant 1 : index
    %c0_17 = arith.constant 0 : index
    %16 = vector.load %arg5[%c0_16, %c1, %c0_17] : memref<10x18x4xf32, #tpu.memory_space<vmem>>, vector<8x16x4xf32>
    %17 = vector.shape_cast %16 : vector<8x16x4xf32> to vector<128x4xf32>
    %c0_18 = arith.constant 0 : index
    %c4 = arith.constant 4 : index
    %18 = vector.load %arg6[%c0_18, %c4] : memref<128x36xf32, #tpu.memory_space<vmem>>, vector<128x4xf32>
    tpu.vector_store %arg6[%c0_18, %c4], %17 {strides = array<i32>} : memref<128x36xf32, #tpu.memory_space<vmem>>, vector<128x4xf32>,
    %c0_19 = arith.constant 0 : index
    %c2 = arith.constant 2 : index
    %c0_20 = arith.constant 0 : index
    %19 = vector.load %arg5[%c0_19, %c2, %c0_20] : memref<10x18x4xf32, #tpu.memory_space<vmem>>, vector<8x16x4xf32>
    %20 = vector.shape_cast %19 : vector<8x16x4xf32> to vector<128x4xf32>
    %c0_21 = arith.constant 0 : index
    %c8_22 = arith.constant 8 : index
    %21 = vector.load %arg6[%c0_21, %c8_22] : memref<128x36xf32, #tpu.memory_space<vmem>>, vector<128x4xf32>
    tpu.vector_store %arg6[%c0_21, %c8_22], %20 {strides = array<i32>} : memref<128x36xf32, #tpu.memory_space<vmem>>, vector<128x4xf32>,
    %c1_23 = arith.constant 1 : index
    %c0_24 = arith.constant 0 : index
    %c0_25 = arith.constant 0 : index
    %22 = vector.load %arg5[%c1_23, %c0_24, %c0_25] : memref<10x18x4xf32, #tpu.memory_space<vmem>>, vector<8x16x4xf32>
    %23 = vector.shape_cast %22 : vector<8x16x4xf32> to vector<128x4xf32>
    %c0_26 = arith.constant 0 : index
    %c12 = arith.constant 12 : index
    %24 = vector.load %arg6[%c0_26, %c12] : memref<128x36xf32, #tpu.memory_space<vmem>>, vector<128x4xf32>
    tpu.vector_store %arg6[%c0_26, %c12], %23 {strides = array<i32>} : memref<128x36xf32, #tpu.memory_space<vmem>>, vector<128x4xf32>,
    %c1_27 = arith.constant 1 : index
    %c1_28 = arith.constant 1 : index
    %c0_29 = arith.constant 0 : index
    %25 = vector.load %arg5[%c1_27, %c1_28, %c0_29] : memref<10x18x4xf32, #tpu.memory_space<vmem>>, vector<8x16x4xf32>
    %26 = vector.shape_cast %25 : vector<8x16x4xf32> to vector<128x4xf32>
    %c0_30 = arith.constant 0 : index
    %c16 = arith.constant 16 : index
    %27 = vector.load %arg6[%c0_30, %c16] : memref<128x36xf32, #tpu.memory_space<vmem>>, vector<128x4xf32>
    tpu.vector_store %arg6[%c0_30, %c16], %26 {strides = array<i32>} : memref<128x36xf32, #tpu.memory_space<vmem>>, vector<128x4xf32>,
    %c1_31 = arith.constant 1 : index
    %c2_32 = arith.constant 2 : index
    %c0_33 = arith.constant 0 : index
    %28 = vector.load %arg5[%c1_31, %c2_32, %c0_33] : memref<10x18x4xf32, #tpu.memory_space<vmem>>, vector<8x16x4xf32>
    %29 = vector.shape_cast %28 : vector<8x16x4xf32> to vector<128x4xf32>
    %c0_34 = arith.constant 0 : index
    %c20 = arith.constant 20 : index
    %30 = vector.load %arg6[%c0_34, %c20] : memref<128x36xf32, #tpu.memory_space<vmem>>, vector<128x4xf32>
    tpu.vector_store %arg6[%c0_34, %c20], %29 {strides = array<i32>} : memref<128x36xf32, #tpu.memory_space<vmem>>, vector<128x4xf32>,
    %c2_35 = arith.constant 2 : index
    %c0_36 = arith.constant 0 : index
    %c0_37 = arith.constant 0 : index
    %31 = vector.load %arg5[%c2_35, %c0_36, %c0_37] : memref<10x18x4xf32, #tpu.memory_space<vmem>>, vector<8x16x4xf32>
    %32 = vector.shape_cast %31 : vector<8x16x4xf32> to vector<128x4xf32>
    %c0_38 = arith.constant 0 : index
    %c24 = arith.constant 24 : index
    %33 = vector.load %arg6[%c0_38, %c24] : memref<128x36xf32, #tpu.memory_space<vmem>>, vector<128x4xf32>
    tpu.vector_store %arg6[%c0_38, %c24], %32 {strides = array<i32>} : memref<128x36xf32, #tpu.memory_space<vmem>>, vector<128x4xf32>,
    %c2_39 = arith.constant 2 : index
    %c1_40 = arith.constant 1 : index
    %c0_41 = arith.constant 0 : index
    %34 = vector.load %arg5[%c2_39, %c1_40, %c0_41] : memref<10x18x4xf32, #tpu.memory_space<vmem>>, vector<8x16x4xf32>
    %35 = vector.shape_cast %34 : vector<8x16x4xf32> to vector<128x4xf32>
    %c0_42 = arith.constant 0 : index
    %c28 = arith.constant 28 : index
    %36 = vector.load %arg6[%c0_42, %c28] : memref<128x36xf32, #tpu.memory_space<vmem>>, vector<128x4xf32>
    tpu.vector_store %arg6[%c0_42, %c28], %35 {strides = array<i32>} : memref<128x36xf32, #tpu.memory_space<vmem>>, vector<128x4xf32>,
    %c2_43 = arith.constant 2 : index
    %c2_44 = arith.constant 2 : index
    %c0_45 = arith.constant 0 : index
    %37 = vector.load %arg5[%c2_43, %c2_44, %c0_45] : memref<10x18x4xf32, #tpu.memory_space<vmem>>, vector<8x16x4xf32>
    %38 = vector.shape_cast %37 : vector<8x16x4xf32> to vector<128x4xf32>
    %c0_46 = arith.constant 0 : index
    %c32 = arith.constant 32 : index
    %39 = vector.load %arg6[%c0_46, %c32] : memref<128x36xf32, #tpu.memory_space<vmem>>, vector<128x4xf32>
    tpu.vector_store %arg6[%c0_46, %c32], %38 {strides = array<i32>} : memref<128x36xf32, #tpu.memory_space<vmem>>, vector<128x4xf32>,
    %c0_47 = arith.constant 0 : index
    %c0_48 = arith.constant 0 : index
    %40 = vector.load %arg3[%c0_47, %c0_48] : memref<8x36xbf16, #tpu.memory_space<vmem>>, vector<8x36xbf16>
    %41 = arith.extf %40 : vector<8x36xbf16> to vector<8x36xf32>
    %c0_49 = arith.constant 0 : index
    %c0_50 = arith.constant 0 : index
    %42 = vector.load %arg6[%c0_49, %c0_50] : memref<128x36xf32, #tpu.memory_space<vmem>>, vector<128x36xf32>
    %cst = arith.constant dense<0.000000e+00> : vector<8x128xf32>
    %43 = tpu.matmul %41, %42, %cst {dimension_numbers = #tpu.dot_dimension_numbers<[1], [1], [0], [0], [0, 0, 1, 0], [], []>} : vector<8x36xf32>, vector<128x36xf32>, vector<8x128xf32> -> vector<8x128xf32>
    %cst_51 = arith.constant dense<0.000000e+00> : vector<8xf32>
    %44 = vector.multi_reduction <add>, %43, %cst_51 [1] : vector<8x128xf32> to vector<8xf32>
    %45 = vector.shape_cast %44 : vector<8xf32> to vector<8x1xf32>
    %cst_52 = arith.constant 7.812500e-03 : f32
    %46 = vector.broadcast %cst_52 : f32 to vector<8x1xf32>
    %47 = arith.mulf %45, %46 : vector<8x1xf32>
    %48 = vector.broadcast %47 : vector<8x1xf32> to vector<8x128xf32>
    %49 = arith.subf %43, %48 : vector<8x128xf32>
    %50 = arith.mulf %49, %49 : vector<8x128xf32>
    %cst_53 = arith.constant dense<0.000000e+00> : vector<8xf32>
    %51 = vector.multi_reduction <add>, %50, %cst_53 [1] : vector<8x128xf32> to vector<8xf32>
    %52 = vector.shape_cast %51 : vector<8xf32> to vector<8x1xf32>
    %c0_54 = arith.constant 0 : index
    %c0_55 = arith.constant 0 : index
    %c0_56 = arith.constant 0 : index
    %c0_57 = arith.constant 0 : index
    %53 = vector.load %arg4[%c0_54, %c0_55, %c0_56, %c0_57] : memref<1x1x8x2xf32, #tpu.memory_space<vmem>>, vector<1x1x8x1xf32>
    %54 = vector.shape_cast %53 : vector<1x1x8x1xf32> to vector<8x1xf32>
    %55 = vector.shape_cast %45 : vector<8x1xf32> to vector<1x1x8x1xf32>
    tpu.vector_store %arg4[%c0_54, %c0_55, %c0_56, %c0_57], %55 {strides = array<i32>} : memref<1x1x8x2xf32, #tpu.memory_space<vmem>>, vector<1x1x8x1xf32>,
    %c0_58 = arith.constant 0 : index
    %c0_59 = arith.constant 0 : index
    %c0_60 = arith.constant 0 : index
    %c1_61 = arith.constant 1 : index
    %56 = vector.load %arg4[%c0_58, %c0_59, %c0_60, %c1_61] : memref<1x1x8x2xf32, #tpu.memory_space<vmem>>, vector<1x1x8x1xf32>
    %57 = vector.shape_cast %56 : vector<1x1x8x1xf32> to vector<8x1xf32>
    %58 = vector.shape_cast %52 : vector<8x1xf32> to vector<1x1x8x1xf32>
    tpu.vector_store %arg4[%c0_58, %c0_59, %c0_60, %c1_61], %58 {strides = array<i32>} : memref<1x1x8x2xf32, #tpu.memory_space<vmem>>, vector<1x1x8x1xf32>,
    return
  }
  func.func @transform_0(%arg0: i32, %arg1: i32) -> (i32, i32, i32, i32) {
    %c0_i32 = arith.constant 0 : i32
    %c0_i32_0 = arith.constant 0 : i32
    %c0_i32_1 = arith.constant 0 : i32
    %c0_i32_2 = arith.constant 0 : i32
    return %arg0, %c0_i32, %c0_i32_0, %c0_i32_1 : i32, i32, i32, i32
  }
  func.func @transform_1(%arg0: i32, %arg1: i32) -> (i32, i32) {
    %c0_i32 = arith.constant 0 : i32
    %c0_i32_0 = arith.constant 0 : i32
    %c0_i32_1 = arith.constant 0 : i32
    return %c0_i32, %c0_i32_0 : i32, i32
  }
  func.func @transform_2(%arg0: i32, %arg1: i32) -> (i32, i32, i32, i32) {
    %c0_i32 = arith.constant 0 : i32
    %c0_i32_0 = arith.constant 0 : i32
    %c0_i32_1 = arith.constant 0 : i32
    return %arg0, %arg1, %c0_i32, %c0_i32_0 : i32, i32, i32, i32
  }
}

module attributes {stable_mosaic.version = 11 : i64} {
  func.func @_conv_affine_kernel(%arg0: i32, %arg1: i32, %arg2: memref<1x18x18x4xbf16, #tpu.memory_space<vmem>>, %arg3: memref<8x36xbf16, #tpu.memory_space<vmem>>, %arg4: memref<2x8x1xf32, #tpu.memory_space<vmem>>, %arg5: memref<1x8x128xf32, #tpu.memory_space<vmem>>, %arg6: memref<10x18x4xf32, #tpu.memory_space<vmem>>, %arg7: memref<128x36xf32, #tpu.memory_space<vmem>>) attributes {dimension_semantics = [#tpu.dimension_semantics<parallel>, #tpu.dimension_semantics<parallel>], iteration_bounds = array<i64: 2, 2>, scalar_prefetch = 0 : i64, scratch_operands = 2 : i64, tpu.core_type = #tpu.core_type<tc>, window_params = [{transform_indices = @transform_0, window_bounds = array<i64: 1, 18, 18, 4>}, {pipeline_mode = #tpu.pipeline_mode<synchronous>, transform_indices = @transform_1, window_bounds = array<i64: 8, 36>}, {pipeline_mode = #tpu.pipeline_mode<synchronous>, transform_indices = @transform_2, window_bounds = array<i64: 2, 8, 1>}, {transform_indices = @transform_3, window_bounds = array<i64: 1, 8, 128>}]} {
    %c8_i32 = arith.constant 8 : i32
    %0 = arith.muli %arg1, %c8_i32 : i32
    %c0_i32 = arith.constant 0 : i32
    %1 = arith.addi %0, %c0_i32 : i32
    %c0 = arith.constant 0 : index
    %2 = arith.index_cast %1 : i32 to index
    %c0_0 = arith.constant 0 : index
    %c0_1 = arith.constant 0 : index
    %3 = vector.load %arg2[%c0, %2, %c0_0, %c0_1] : memref<1x18x18x4xbf16, #tpu.memory_space<vmem>>, vector<1x8x18x4xbf16>
    %4 = vector.shape_cast %3 : vector<1x8x18x4xbf16> to vector<8x18x4xbf16>
    %5 = arith.extf %4 : vector<8x18x4xbf16> to vector<8x18x4xf32>
    %c0_2 = arith.constant 0 : index
    %c0_3 = arith.constant 0 : index
    %c0_4 = arith.constant 0 : index
    %6 = vector.load %arg6[%c0_2, %c0_3, %c0_4] : memref<10x18x4xf32, #tpu.memory_space<vmem>>, vector<8x18x4xf32>
    tpu.vector_store %arg6[%c0_2, %c0_3, %c0_4], %5 {strides = array<i32>} : memref<10x18x4xf32, #tpu.memory_space<vmem>>, vector<8x18x4xf32>,
    %c8_i32_5 = arith.constant 8 : i32
    %7 = arith.addi %0, %c8_i32_5 : i32
    %c0_6 = arith.constant 0 : index
    %8 = arith.index_cast %7 : i32 to index
    %c0_7 = arith.constant 0 : index
    %c0_8 = arith.constant 0 : index
    %9 = vector.load %arg2[%c0_6, %8, %c0_7, %c0_8] : memref<1x18x18x4xbf16, #tpu.memory_space<vmem>>, vector<1x2x18x4xbf16>
    %10 = vector.shape_cast %9 : vector<1x2x18x4xbf16> to vector<2x18x4xbf16>
    %11 = arith.extf %10 : vector<2x18x4xbf16> to vector<2x18x4xf32>
    %c8 = arith.constant 8 : index
    %c0_9 = arith.constant 0 : index
    %c0_10 = arith.constant 0 : index
    %12 = vector.load %arg6[%c8, %c0_9, %c0_10] : memref<10x18x4xf32, #tpu.memory_space<vmem>>, vector<2x18x4xf32>
    tpu.vector_store %arg6[%c8, %c0_9, %c0_10], %11 {strides = array<i32>} : memref<10x18x4xf32, #tpu.memory_space<vmem>>, vector<2x18x4xf32>,
    %c0_11 = arith.constant 0 : index
    %c0_12 = arith.constant 0 : index
    %c0_13 = arith.constant 0 : index
    %13 = vector.load %arg6[%c0_11, %c0_12, %c0_13] : memref<10x18x4xf32, #tpu.memory_space<vmem>>, vector<8x16x4xf32>
    %14 = vector.shape_cast %13 : vector<8x16x4xf32> to vector<128x4xf32>
    %c0_14 = arith.constant 0 : index
    %c0_15 = arith.constant 0 : index
    %15 = vector.load %arg7[%c0_14, %c0_15] : memref<128x36xf32, #tpu.memory_space<vmem>>, vector<128x4xf32>
    tpu.vector_store %arg7[%c0_14, %c0_15], %14 {strides = array<i32>} : memref<128x36xf32, #tpu.memory_space<vmem>>, vector<128x4xf32>,
    %c0_16 = arith.constant 0 : index
    %c1 = arith.constant 1 : index
    %c0_17 = arith.constant 0 : index
    %16 = vector.load %arg6[%c0_16, %c1, %c0_17] : memref<10x18x4xf32, #tpu.memory_space<vmem>>, vector<8x16x4xf32>
    %17 = vector.shape_cast %16 : vector<8x16x4xf32> to vector<128x4xf32>
    %c0_18 = arith.constant 0 : index
    %c4 = arith.constant 4 : index
    %18 = vector.load %arg7[%c0_18, %c4] : memref<128x36xf32, #tpu.memory_space<vmem>>, vector<128x4xf32>
    tpu.vector_store %arg7[%c0_18, %c4], %17 {strides = array<i32>} : memref<128x36xf32, #tpu.memory_space<vmem>>, vector<128x4xf32>,
    %c0_19 = arith.constant 0 : index
    %c2 = arith.constant 2 : index
    %c0_20 = arith.constant 0 : index
    %19 = vector.load %arg6[%c0_19, %c2, %c0_20] : memref<10x18x4xf32, #tpu.memory_space<vmem>>, vector<8x16x4xf32>
    %20 = vector.shape_cast %19 : vector<8x16x4xf32> to vector<128x4xf32>
    %c0_21 = arith.constant 0 : index
    %c8_22 = arith.constant 8 : index
    %21 = vector.load %arg7[%c0_21, %c8_22] : memref<128x36xf32, #tpu.memory_space<vmem>>, vector<128x4xf32>
    tpu.vector_store %arg7[%c0_21, %c8_22], %20 {strides = array<i32>} : memref<128x36xf32, #tpu.memory_space<vmem>>, vector<128x4xf32>,
    %c1_23 = arith.constant 1 : index
    %c0_24 = arith.constant 0 : index
    %c0_25 = arith.constant 0 : index
    %22 = vector.load %arg6[%c1_23, %c0_24, %c0_25] : memref<10x18x4xf32, #tpu.memory_space<vmem>>, vector<8x16x4xf32>
    %23 = vector.shape_cast %22 : vector<8x16x4xf32> to vector<128x4xf32>
    %c0_26 = arith.constant 0 : index
    %c12 = arith.constant 12 : index
    %24 = vector.load %arg7[%c0_26, %c12] : memref<128x36xf32, #tpu.memory_space<vmem>>, vector<128x4xf32>
    tpu.vector_store %arg7[%c0_26, %c12], %23 {strides = array<i32>} : memref<128x36xf32, #tpu.memory_space<vmem>>, vector<128x4xf32>,
    %c1_27 = arith.constant 1 : index
    %c1_28 = arith.constant 1 : index
    %c0_29 = arith.constant 0 : index
    %25 = vector.load %arg6[%c1_27, %c1_28, %c0_29] : memref<10x18x4xf32, #tpu.memory_space<vmem>>, vector<8x16x4xf32>
    %26 = vector.shape_cast %25 : vector<8x16x4xf32> to vector<128x4xf32>
    %c0_30 = arith.constant 0 : index
    %c16 = arith.constant 16 : index
    %27 = vector.load %arg7[%c0_30, %c16] : memref<128x36xf32, #tpu.memory_space<vmem>>, vector<128x4xf32>
    tpu.vector_store %arg7[%c0_30, %c16], %26 {strides = array<i32>} : memref<128x36xf32, #tpu.memory_space<vmem>>, vector<128x4xf32>,
    %c1_31 = arith.constant 1 : index
    %c2_32 = arith.constant 2 : index
    %c0_33 = arith.constant 0 : index
    %28 = vector.load %arg6[%c1_31, %c2_32, %c0_33] : memref<10x18x4xf32, #tpu.memory_space<vmem>>, vector<8x16x4xf32>
    %29 = vector.shape_cast %28 : vector<8x16x4xf32> to vector<128x4xf32>
    %c0_34 = arith.constant 0 : index
    %c20 = arith.constant 20 : index
    %30 = vector.load %arg7[%c0_34, %c20] : memref<128x36xf32, #tpu.memory_space<vmem>>, vector<128x4xf32>
    tpu.vector_store %arg7[%c0_34, %c20], %29 {strides = array<i32>} : memref<128x36xf32, #tpu.memory_space<vmem>>, vector<128x4xf32>,
    %c2_35 = arith.constant 2 : index
    %c0_36 = arith.constant 0 : index
    %c0_37 = arith.constant 0 : index
    %31 = vector.load %arg6[%c2_35, %c0_36, %c0_37] : memref<10x18x4xf32, #tpu.memory_space<vmem>>, vector<8x16x4xf32>
    %32 = vector.shape_cast %31 : vector<8x16x4xf32> to vector<128x4xf32>
    %c0_38 = arith.constant 0 : index
    %c24 = arith.constant 24 : index
    %33 = vector.load %arg7[%c0_38, %c24] : memref<128x36xf32, #tpu.memory_space<vmem>>, vector<128x4xf32>
    tpu.vector_store %arg7[%c0_38, %c24], %32 {strides = array<i32>} : memref<128x36xf32, #tpu.memory_space<vmem>>, vector<128x4xf32>,
    %c2_39 = arith.constant 2 : index
    %c1_40 = arith.constant 1 : index
    %c0_41 = arith.constant 0 : index
    %34 = vector.load %arg6[%c2_39, %c1_40, %c0_41] : memref<10x18x4xf32, #tpu.memory_space<vmem>>, vector<8x16x4xf32>
    %35 = vector.shape_cast %34 : vector<8x16x4xf32> to vector<128x4xf32>
    %c0_42 = arith.constant 0 : index
    %c28 = arith.constant 28 : index
    %36 = vector.load %arg7[%c0_42, %c28] : memref<128x36xf32, #tpu.memory_space<vmem>>, vector<128x4xf32>
    tpu.vector_store %arg7[%c0_42, %c28], %35 {strides = array<i32>} : memref<128x36xf32, #tpu.memory_space<vmem>>, vector<128x4xf32>,
    %c2_43 = arith.constant 2 : index
    %c2_44 = arith.constant 2 : index
    %c0_45 = arith.constant 0 : index
    %37 = vector.load %arg6[%c2_43, %c2_44, %c0_45] : memref<10x18x4xf32, #tpu.memory_space<vmem>>, vector<8x16x4xf32>
    %38 = vector.shape_cast %37 : vector<8x16x4xf32> to vector<128x4xf32>
    %c0_46 = arith.constant 0 : index
    %c32 = arith.constant 32 : index
    %39 = vector.load %arg7[%c0_46, %c32] : memref<128x36xf32, #tpu.memory_space<vmem>>, vector<128x4xf32>
    tpu.vector_store %arg7[%c0_46, %c32], %38 {strides = array<i32>} : memref<128x36xf32, #tpu.memory_space<vmem>>, vector<128x4xf32>,
    %c0_47 = arith.constant 0 : index
    %c0_48 = arith.constant 0 : index
    %40 = vector.load %arg3[%c0_47, %c0_48] : memref<8x36xbf16, #tpu.memory_space<vmem>>, vector<8x36xbf16>
    %41 = arith.extf %40 : vector<8x36xbf16> to vector<8x36xf32>
    %c0_49 = arith.constant 0 : index
    %c0_50 = arith.constant 0 : index
    %42 = vector.load %arg7[%c0_49, %c0_50] : memref<128x36xf32, #tpu.memory_space<vmem>>, vector<128x36xf32>
    %cst = arith.constant dense<0.000000e+00> : vector<8x128xf32>
    %43 = tpu.matmul %41, %42, %cst {dimension_numbers = #tpu.dot_dimension_numbers<[1], [1], [0], [0], [0, 0, 1, 0], [], []>} : vector<8x36xf32>, vector<128x36xf32>, vector<8x128xf32> -> vector<8x128xf32>
    %c0_51 = arith.constant 0 : index
    %c0_52 = arith.constant 0 : index
    %c0_53 = arith.constant 0 : index
    %44 = vector.load %arg4[%c0_51, %c0_52, %c0_53] : memref<2x8x1xf32, #tpu.memory_space<vmem>>, vector<1x8x1xf32>
    %45 = vector.shape_cast %44 : vector<1x8x1xf32> to vector<8x1xf32>
    %46 = vector.broadcast %45 : vector<8x1xf32> to vector<8x128xf32>
    %47 = arith.mulf %43, %46 : vector<8x128xf32>
    %c1_54 = arith.constant 1 : index
    %c0_55 = arith.constant 0 : index
    %c0_56 = arith.constant 0 : index
    %48 = vector.load %arg4[%c1_54, %c0_55, %c0_56] : memref<2x8x1xf32, #tpu.memory_space<vmem>>, vector<1x8x1xf32>
    %49 = vector.shape_cast %48 : vector<1x8x1xf32> to vector<8x1xf32>
    %50 = vector.broadcast %49 : vector<8x1xf32> to vector<8x128xf32>
    %51 = arith.addf %47, %50 : vector<8x128xf32>
    %52 = vector.shape_cast %51 : vector<8x128xf32> to vector<1x8x128xf32>
    %c0_57 = arith.constant 0 : index
    %c0_58 = arith.constant 0 : index
    %c0_59 = arith.constant 0 : index
    %53 = vector.load %arg5[%c0_57, %c0_58, %c0_59] : memref<1x8x128xf32, #tpu.memory_space<vmem>>, vector<1x8x128xf32>
    tpu.vector_store %arg5[%c0_57, %c0_58, %c0_59], %52 {strides = array<i32>} : memref<1x8x128xf32, #tpu.memory_space<vmem>>, vector<1x8x128xf32>,
    return
  }
  func.func @transform_0(%arg0: i32, %arg1: i32) -> (i32, i32, i32, i32) {
    %c0_i32 = arith.constant 0 : i32
    %c0_i32_0 = arith.constant 0 : i32
    %c0_i32_1 = arith.constant 0 : i32
    %c0_i32_2 = arith.constant 0 : i32
    return %arg0, %c0_i32, %c0_i32_0, %c0_i32_1 : i32, i32, i32, i32
  }
  func.func @transform_1(%arg0: i32, %arg1: i32) -> (i32, i32) {
    %c0_i32 = arith.constant 0 : i32
    %c0_i32_0 = arith.constant 0 : i32
    %c0_i32_1 = arith.constant 0 : i32
    return %c0_i32, %c0_i32_0 : i32, i32
  }
  func.func @transform_2(%arg0: i32, %arg1: i32) -> (i32, i32, i32) {
    %c0_i32 = arith.constant 0 : i32
    %c0_i32_0 = arith.constant 0 : i32
    %c0_i32_1 = arith.constant 0 : i32
    %c0_i32_2 = arith.constant 0 : i32
    return %c0_i32, %c0_i32_0, %c0_i32_1 : i32, i32, i32
  }
  func.func @transform_3(%arg0: i32, %arg1: i32) -> (i32, i32, i32) {
    %c0_i32 = arith.constant 0 : i32
    %c0_i32_0 = arith.constant 0 : i32
    return %arg0, %c0_i32, %arg1 : i32, i32, i32
  }
}

</mosaic_0001>

<llo_original>
// kernel: conv2d_batchnorm.2
$region0: #{conv2d_batchnorm.2}
  #allocation0 [shape = 'u32[]', space=smem, size = 0x4, offset = 0x4, fixed_abs, tag = 'smem constant byte address 0x4 - core index']
  #allocation1 [shape = 'u32[144,128]{1,0:T(1,128)}', space=vmem, size = 0x12000, scoped, tag = 'internal scratch']
  #allocation2 [shape = 'f32[10,18,4]{2,1,0:T(8,128)}', space=vmem, size = 0x1e000, scoped, tag = 'scratch operand']
  #allocation3 [shape = 'f32[128,36]{1,0:T(8,128)}', space=vmem, size = 0x10000, scoped, tag = 'scratch operand']
  %s0 = inlined_call_operand.vmem [shape: bf16[2,18,18,4], index: 0, kind: input, shape index: {}]
  %s1 = inlined_call_operand.vmem [shape: bf16[8,36], index: 1, kind: input, shape index: {}]
  %s2 = inlined_call_operand.vmem [shape: f32[2,2,8,2], index: 2, kind: output, shape index: {}]
  %s3 = sld [smem:[#allocation0]]
  $region41: #{conv2d_batchnorm.2} parent=0
    _
  %s5 = ssub.s32 1, %s3
  %s6 = scalar_select 0, %s5, %s3
  loop: start=0, step=1, limit=6
  $region2: #{conv2d_batchnorm.2} parent=0 // loop_pre_header
    _
  $region3: #{conv2d_batchnorm.2} parent=0 // loop_header
    %s8 = sphi 0, %s12
    %p9 = scmp.ge.s32.totalorder %s8, 6
    %s15 = sphi 0, %s27
    %s16 = sphi 0, %s23
    %s17 = sphi 0, %s15
    %s18 = sphi 0, %s16
    %s19 = sphi 0, %s17
    %s20 = sphi 0, %s18
    %s30 = sphi 0, %s32
    %s33 = sphi 0, %s30
    %s34 = sphi 0, %s33
    %s50 = sphi 0, %s34
    %s54 = sphi 0, %s54
    %s56 = sphi 0, %s54
    %s57 = sphi 0, %s56
    %s71 = sphi 0, %s57
    %s79 = sphi 0, %s81
    %s82 = sphi 0, %s79
    %s83 = sphi 0, %s82
    %s99 = sphi 0, %s83
  $region4: #{conv2d_batchnorm.2} parent=0 // loop_header_branch
    %11 = sbr.rel (%p9) target = $region8
  $region5: #{conv2d_batchnorm.2} parent=0 // loop_body
    %s13 = ssub.s32 %s8, 1
    %s14 = ssub.s32 %s8, 2
    %s21 = sadd.s32 1, %s16
    %p22 = scmp.ge.s32.totalorder %s21, 2
    %s23 = scalar_select %p22, 0, %s21
    %s24 = sadd.s32 1, %s15
    %s25 = scalar_select %p22, %s24, %s15
    %p26 = scmp.ge.s32.totalorder %s25, 2
    %s27 = scalar_select %p26, 0, %s25
    %s28 = ssub.s32 %s15, %s27
    %p29 = scmp.eq.s32.totalorder %s28, 0
    %s31 = sadd.s32 %s30, 1
    %s32 = scalar_select %p29, %s30, %s31
    %p35 = pneg %p29
    %p36 = scmp.eq.s32.totalorder %s8, 3
    %p37 = por %p35, %p36
    %p38 = scmp.ne.s32.totalorder %s30, %s33
    %p39 = scmp.eq.s32.totalorder %s8, 0
    %p40 = por %p38, %p39
    %p41 = scmp.ne.s32.totalorder %s30, %s33
    %p42 = scmp.eq.s32.totalorder %s13, 3
    %p43 = por %p41, %p42
    %p44 = scmp.ne.s32.totalorder %s33, %s34
    %p45 = scmp.eq.s32.totalorder %s13, 0
    %p46 = por %p44, %p45
    %p47 = scmp.ne.s32.totalorder %s33, %s34
    %p48 = scmp.eq.s32.totalorder %s14, 3
    %p49 = por %p47, %p48
    %p51 = scmp.ne.s32.totalorder %s34, %s50
    %p52 = scmp.eq.s32.totalorder %s14, 0
    %p53 = por %p51, %p52
    %s55 = sadd.s32 %s54, 1
    %p58 = scmp.eq.s32.totalorder %s8, 3
    %p59 = scmp.ne.s32.totalorder %s54, %s56
    %p60 = scmp.eq.s32.totalorder %s8, 0
    %p61 = por %p59, %p60
    %p62 = scmp.ne.s32.totalorder %s54, %s56
    %p63 = scmp.eq.s32.totalorder %s13, 3
    %p64 = por %p62, %p63
    %p65 = scmp.ne.s32.totalorder %s56, %s57
    %p66 = scmp.eq.s32.totalorder %s13, 0
    %p67 = por %p65, %p66
    %p68 = scmp.ne.s32.totalorder %s56, %s57
    %p69 = scmp.eq.s32.totalorder %s14, 3
    %p70 = por %p68, %p69
    %p72 = scmp.ne.s32.totalorder %s57, %s71
    %p73 = scmp.eq.s32.totalorder %s14, 0
    %p74 = por %p72, %p73
    %s75 = ssub.s32 %s15, %s27
    %s76 = ssub.s32 %s16, %s23
    %s77 = sor.u32 %s75, %s76
    %p78 = scmp.eq.s32.totalorder %s77, 0
    %s80 = sadd.s32 %s79, 1
    %s81 = scalar_select %p78, %s79, %s80
    %p84 = pneg %p78
    %p85 = scmp.eq.s32.totalorder %s8, 3
    %p86 = por %p84, %p85
    %p87 = scmp.ne.s32.totalorder %s79, %s82
    %p88 = scmp.eq.s32.totalorder %s8, 0
    %p89 = por %p87, %p88
    %p90 = scmp.ne.s32.totalorder %s79, %s82
    %p91 = scmp.eq.s32.totalorder %s13, 3
    %p92 = por %p90, %p91
    %p93 = scmp.ne.s32.totalorder %s82, %s83
    %p94 = scmp.eq.s32.totalorder %s13, 0
    %p95 = por %p93, %p94
    %p96 = scmp.ne.s32.totalorder %s82, %s83
    %p97 = scmp.eq.s32.totalorder %s14, 3
    %p98 = por %p96, %p97
    %p100 = scmp.ne.s32.totalorder %s83, %s99
    %p101 = scmp.eq.s32.totalorder %s14, 0
    %p102 = por %p100, %p101
    %p103 = scmp.le.s32.totalorder 1, %s8
    %p104 = scmp.lt.s32.totalorder %s8, 5
    %p105 = pnand %p103, %p104
    %p106 = pneg %p105
    // Predicated region
    $region9: #{conv2d_batchnorm.2} parent=5 // pred_check
      _
    $region10: #{conv2d_batchnorm.2} parent=5 // pred_check_branch
      %108 = sbr.rel (%p105) target = $region12
    $region11: #{conv2d_batchnorm.2} parent=5 // pred_region
      %s109 = ssub.s32 %s8, 1
      // Predicated region
      $region13: #{conv2d_batchnorm.2} parent=11 // pred_check
        %p110 = pneg %p67
      $region14: #{conv2d_batchnorm.2} parent=11 // pred_check_branch
        %112 = sbr.rel (%p110) target = $region16
      $region15: #{conv2d_batchnorm.2} parent=11 // pred_region
        _
      $region16: #{conv2d_batchnorm.2} parent=11 // pred_fallthru
        _
    $region12: #{conv2d_batchnorm.2} parent=5 // pred_fallthru
      _
    %p113 = scmp.lt.s32.totalorder %s8, 4
    // Predicated region
    $region17: #{conv2d_batchnorm.2} parent=5 // pred_check
      %p114 = pneg %p113
    $region18: #{conv2d_batchnorm.2} parent=5 // pred_check_branch
      %116 = sbr.rel (%p114) target = $region20
    $region19: #{conv2d_batchnorm.2} parent=5 // pred_region
      // Predicated region
      $region21: #{conv2d_batchnorm.2} parent=19 // pred_check
        %p117 = pneg %p40
      $region22: #{conv2d_batchnorm.2} parent=19 // pred_check_branch
        %119 = sbr.rel (%p117) target = $region24
      $region23: #{conv2d_batchnorm.2} parent=19 // pred_region
        %p120 = scmp.lt.s32.totalorder %s15, 1
        %s121 = scalar_select %p120, %s15, 1
        %s122 = smul.addr %s121, 54
        %s123 = smul.addr %s122, 4
        %s124 = scalar_lea.vmem %s0, %s123
      $region24: #{conv2d_batchnorm.2} parent=19 // pred_fallthru
        _
    $region20: #{conv2d_batchnorm.2} parent=5 // pred_fallthru
      _
    %p125 = scmp.le.s32.totalorder 1, %s8
    %p126 = scmp.lt.s32.totalorder %s8, 5
    %p127 = pnand %p125, %p126
    %p128 = pneg %p127
    // Predicated region
    $region25: #{conv2d_batchnorm.2} parent=5 // pred_check
      _
    $region26: #{conv2d_batchnorm.2} parent=5 // pred_check_branch
      %130 = sbr.rel (%p127) target = $region28
    $region27: #{conv2d_batchnorm.2} parent=5 // pred_region
      %s131 = ssub.s32 %s8, 1
      %p132 = scmp.lt.s32.totalorder %s17, 1
      %s133 = scalar_select %p132, %s17, 1
      %s134 = smul.addr %s133, 54
      %s135 = smul.addr %s134, 4
      %s136 = scalar_lea.vmem %s0, %s135
      %p137 = pneg %p46
      %p138 = pneg %p43
      %p139 = pneg %p67
      %p140 = pneg %p64
      %p141 = pneg %p95
      %p142 = pneg %p92
      %p143 = scmp.lt.s32.totalorder %s17, 1
      %s144 = scalar_select %p143, %s17, 1
      %p145 = scmp.lt.s32.totalorder %s18, 1
      %s146 = scalar_select %p145, %s18, 1
      %s147 = smul.addr %s144, 2
      %s148 = sadd.s32 %s146, %s147
      %s149 = smul.addr %s148, 8
      %s150 = scalar_lea.vmem %s2, %s149
      %p151 = scmp.lt.s32.totalorder %s17, 1
      %s152 = scalar_select %p151, %s17, 1
      %s153 = smul.addr %s152, 54
      %s154 = smul.addr %s153, 4
      %s155 = scalar_lea.vmem %s0, %s154
      %p156 = scmp.lt.s32.totalorder %s17, 1
      %s157 = scalar_select %p156, %s17, 1
      %p158 = scmp.lt.s32.totalorder %s18, 1
      %s159 = scalar_select %p158, %s18, 1
      %s160 = smul.addr %s157, 2
      %s161 = sadd.s32 %s159, %s160
      %s162 = smul.addr %s161, 8
      %s163 = scalar_lea.vmem %s2, %s162
      %s164 = smul.u32 %s18, 8
      %s165 = smul.u32 %s164, 3
      %s166 = smul.addr %s165, 4
      %s167 = scalar_lea.vmem %s155, %s166
      %v168 = vld [vmem:[%s167] sm:$0xf]
      %v169 = vld [vmem:[%s167 + $0x4] sm:$0xf]
      %v170 = vld [vmem:[%s167 + $0x8] sm:$0x1]
      %v171 = vld [vmem:[%s167 + $0xc] sm:$0xf]
      %v172 = vld [vmem:[%s167 + $0x10] sm:$0xf]
      %v173 = vld [vmem:[%s167 + $0x14] sm:$0x1]
      %v174 = vld [vmem:[%s167 + $0x18] sm:$0xf]
      %v175 = vld [vmem:[%s167 + $0x1c] sm:$0xf]
      %v176 = vld [vmem:[%s167 + $0x20] sm:$0x1]
      %v177 = vld [vmem:[%s167 + $0x24] sm:$0xf]
      %v178 = vld [vmem:[%s167 + $0x28] sm:$0xf]
      %v179 = vld [vmem:[%s167 + $0x2c] sm:$0x1]
      %v180 = vld [vmem:[%s167 + $0x30] sm:$0xf]
      %v181 = vld [vmem:[%s167 + $0x34] sm:$0xf]
      %v182 = vld [vmem:[%s167 + $0x38] sm:$0x1]
      %v183 = vld [vmem:[%s167 + $0x3c] sm:$0xf]
      %v184 = vld [vmem:[%s167 + $0x40] sm:$0xf]
      %v185 = vld [vmem:[%s167 + $0x44] sm:$0x1]
      %v186 = vld [vmem:[%s167 + $0x48] sm:$0xf]
      %v187 = vld [vmem:[%s167 + $0x4c] sm:$0xf]
      %v188 = vld [vmem:[%s167 + $0x50] sm:$0x1]
      %v189 = vld [vmem:[%s167 + $0x54] sm:$0xf]
      %v190 = vld [vmem:[%s167 + $0x58] sm:$0xf]
      %v191 = vld [vmem:[%s167 + $0x5c] sm:$0x1]
      %v192 = vunpack.c.l.bf16 %v168
      %v193 = vunpack.c.l.bf16 %v169
      %v194 = vunpack.c.l.bf16 %v170
      %v195 = vunpack.c.l.bf16 %v171
      %v196 = vunpack.c.l.bf16 %v172
      %v197 = vunpack.c.l.bf16 %v173
      %v198 = vunpack.c.l.bf16 %v174
      %v199 = vunpack.c.l.bf16 %v175
      %v200 = vunpack.c.l.bf16 %v176
      %v201 = vunpack.c.l.bf16 %v177
      %v202 = vunpack.c.l.bf16 %v178
      %v203 = vunpack.c.l.bf16 %v179
      %v204 = vunpack.c.l.bf16 %v180
      %v205 = vunpack.c.l.bf16 %v181
      %v206 = vunpack.c.l.bf16 %v182
      %v207 = vunpack.c.l.bf16 %v183
      %v208 = vunpack.c.l.bf16 %v184
      %v209 = vunpack.c.l.bf16 %v185
      %v210 = vunpack.c.l.bf16 %v186
      %v211 = vunpack.c.l.bf16 %v187
      %v212 = vunpack.c.l.bf16 %v188
      %v213 = vunpack.c.l.bf16 %v189
      %v214 = vunpack.c.l.bf16 %v190
      %v215 = vunpack.c.l.bf16 %v191
      %vm216 = vcmask 31744
      %217 = vst.msk [vmem:[#allocation2] sm:$0xff] %vm216, %v192
      %218 = vst.msk [vmem:[#allocation2 + $0x8] sm:$0xff] %vm216, %v193
      %vm219 = vcmask 25600
      %220 = vst.msk [vmem:[#allocation2 + $0x10] sm:$0x3] %vm219, %v194
      %221 = vst.msk [vmem:[#allocation2 + $0x18] sm:$0xff] %vm216, %v195
      %222 = vst.msk [vmem:[#allocation2 + $0x20] sm:$0xff] %vm216, %v196
      %223 = vst.msk [vmem:[#allocation2 + $0x28] sm:$0x3] %vm219, %v197
      %224 = vst.msk [vmem:[#allocation2 + $0x30] sm:$0xff] %vm216, %v198
      %225 = vst.msk [vmem:[#allocation2 + $0x38] sm:$0xff] %vm216, %v199
      %226 = vst.msk [vmem:[#allocation2 + $0x40] sm:$0x3] %vm219, %v200
      %227 = vst.msk [vmem:[#allocation2 + $0x48] sm:$0xff] %vm216, %v201
      %228 = vst.msk [vmem:[#allocation2 + $0x50] sm:$0xff] %vm216, %v202
      %229 = vst.msk [vmem:[#allocation2 + $0x58] sm:$0x3] %vm219, %v203
      %230 = vst.msk [vmem:[#allocation2 + $0x60] sm:$0xff] %vm216, %v204
      %231 = vst.msk [vmem:[#allocation2 + $0x68] sm:$0xff] %vm216, %v205
      %232 = vst.msk [vmem:[#allocation2 + $0x70] sm:$0x3] %vm219, %v206
      %233 = vst.msk [vmem:[#allocation2 + $0x78] sm:$0xff] %vm216, %v207
      %234 = vst.msk [vmem:[#allocation2 + $0x80] sm:$0xff] %vm216, %v208
      %235 = vst.msk [vmem:[#allocation2 + $0x88] sm:$0x3] %vm219, %v209
      %236 = vst.msk [vmem:[#allocation2 + $0x90] sm:$0xff] %vm216, %v210
      %237 = vst.msk [vmem:[#allocation2 + $0x98] sm:$0xff] %vm216, %v211
      %238 = vst.msk [vmem:[#allocation2 + $0xa0] sm:$0x3] %vm219, %v212
      %239 = vst.msk [vmem:[#allocation2 + $0xa8] sm:$0xff] %vm216, %v213
      %240 = vst.msk [vmem:[#allocation2 + $0xb0] sm:$0xff] %vm216, %v214
      %241 = vst.msk [vmem:[#allocation2 + $0xb8] sm:$0x3] %vm219, %v215
      %s242 = sadd.s32 %s164, 8
      %s243 = smul.u32 %s242, 3
      %s244 = smul.addr %s243, 4
      %s245 = scalar_lea.vmem %s155, %s244
      %v246 = vld [vmem:[%s245] sm:$0xf]
      %v247 = vld [vmem:[%s245 + $0x4] sm:$0xf]
      %v248 = vld [vmem:[%s245 + $0x8] sm:$0x1]
      %v249 = vld [vmem:[%s245 + $0xc] sm:$0xf]
      %v250 = vld [vmem:[%s245 + $0x10] sm:$0xf]
      %v251 = vld [vmem:[%s245 + $0x14] sm:$0x1]
      %v252 = vunpack.c.l.bf16 %v246
      %v253 = vunpack.c.l.bf16 %v247
      %v254 = vunpack.c.l.bf16 %v248
      %v255 = vunpack.c.l.bf16 %v249
      %v256 = vunpack.c.l.bf16 %v250
      %v257 = vunpack.c.l.bf16 %v251
      %s258 = scalar_lea.vmem [#allocation2], 192
      %259 = vst.msk [vmem:[%s258] sm:$0xff] %vm216, %v252
      %260 = vst.msk [vmem:[%s258 + $0x8] sm:$0xff] %vm216, %v253
      %261 = vst.msk [vmem:[%s258 + $0x10] sm:$0x3] %vm219, %v254
      %262 = vst.msk [vmem:[%s258 + $0x18] sm:$0xff] %vm216, %v255
      %263 = vst.msk [vmem:[%s258 + $0x20] sm:$0xff] %vm216, %v256
      %264 = vst.msk [vmem:[%s258 + $0x28] sm:$0x3] %vm219, %v257
      %v265 = vld [vmem:[#allocation2] sm:$0xff]
      %v266 = vld [vmem:[#allocation2 + $0x8] sm:$0xff]
      %v267 = vld [vmem:[#allocation2 + $0x18] sm:$0xff]
      %v268 = vld [vmem:[#allocation2 + $0x20] sm:$0xff]
      %v269 = vld [vmem:[#allocation2 + $0x30] sm:$0xff]
      %v270 = vld [vmem:[#allocation2 + $0x38] sm:$0xff]
      %v271 = vld [vmem:[#allocation2 + $0x48] sm:$0xff]
      %v272 = vld [vmem:[#allocation2 + $0x50] sm:$0xff]
      %v273 = vld [vmem:[#allocation2 + $0x60] sm:$0xff]
      %v274 = vld [vmem:[#allocation2 + $0x68] sm:$0xff]
      %v275 = vld [vmem:[#allocation2 + $0x78] sm:$0xff]
      %v276 = vld [vmem:[#allocation2 + $0x80] sm:$0xff]
      %v277 = vld [vmem:[#allocation2 + $0x90] sm:$0xff]
      %v278 = vld [vmem:[#allocation2 + $0x98] sm:$0xff]
      %v279 = vld [vmem:[#allocation2 + $0xa8] sm:$0xff]
      %v280 = vld [vmem:[#allocation2 + $0xb0] sm:$0xff]
      %281 = vst.msk [vmem:[#allocation3] sm:$0xff] %vm216, %v265
      %282 = vst.msk [vmem:[#allocation3 + $0x8] sm:$0xff] %vm216, %v266
      %283 = vst.msk [vmem:[#allocation3 + $0x10] sm:$0xff] %vm216, %v267
      %284 = vst.msk [vmem:[#allocation3 + $0x18] sm:$0xff] %vm216, %v268
      %285 = vst.msk [vmem:[#allocation3 + $0x20] sm:$0xff] %vm216, %v269
      %286 = vst.msk [vmem:[#allocation3 + $0x28] sm:$0xff] %vm216, %v270
      %287 = vst.msk [vmem:[#allocation3 + $0x30] sm:$0xff] %vm216, %v271
      %288 = vst.msk [vmem:[#allocation3 + $0x38] sm:$0xff] %vm216, %v272
      %289 = vst.msk [vmem:[#allocation3 + $0x40] sm:$0xff] %vm216, %v273
      %290 = vst.msk [vmem:[#allocation3 + $0x48] sm:$0xff] %vm216, %v274
      %291 = vst.msk [vmem:[#allocation3 + $0x50] sm:$0xff] %vm216, %v275
      %292 = vst.msk [vmem:[#allocation3 + $0x58] sm:$0xff] %vm216, %v276
      %293 = vst.msk [vmem:[#allocation3 + $0x60] sm:$0xff] %vm216, %v277
      %294 = vst.msk [vmem:[#allocation3 + $0x68] sm:$0xff] %vm216, %v278
      %295 = vst.msk [vmem:[#allocation3 + $0x70] sm:$0xff] %vm216, %v279
      %296 = vst.msk [vmem:[#allocation3 + $0x78] sm:$0xff] %vm216, %v280
      %v297 = vld [vmem:[#allocation2 + $0x1] sm:$0xff]
      %v298 = vld [vmem:[#allocation2 + $0x9] sm:$0xff]
      %v299 = vld [vmem:[#allocation2 + $0x19] sm:$0xff]
      %v300 = vld [vmem:[#allocation2 + $0x21] sm:$0xff]
      %v301 = vld [vmem:[#allocation2 + $0x31] sm:$0xff]
      %v302 = vld [vmem:[#allocation2 + $0x39] sm:$0xff]
      %v303 = vld [vmem:[#allocation2 + $0x49] sm:$0xff]
      %v304 = vld [vmem:[#allocation2 + $0x51] sm:$0xff]
      %v305 = vld [vmem:[#allocation2 + $0x61] sm:$0xff]
      %v306 = vld [vmem:[#allocation2 + $0x69] sm:$0xff]
      %v307 = vld [vmem:[#allocation2 + $0x79] sm:$0xff]
      %v308 = vld [vmem:[#allocation2 + $0x81] sm:$0xff]
      %v309 = vld [vmem:[#allocation2 + $0x91] sm:$0xff]
      %v310 = vld [vmem:[#allocation2 + $0x99] sm:$0xff]
      %v311 = vld [vmem:[#allocation2 + $0xa9] sm:$0xff]
      %v312 = vld [vmem:[#allocation2 + $0xb1] sm:$0xff]
      %329 = vrot.lane.b32.xlu0 %v297, 4
      %v330 = vpop.permute.xlu0 %329
      %331 = vrot.lane.b32.xlu0 %v298, 4
      %v332 = vpop.permute.xlu0 %331
      %333 = vrot.lane.b32.xlu0 %v299, 4
      %v334 = vpop.permute.xlu0 %333
      %335 = vrot.lane.b32.xlu0 %v300, 4
      %v336 = vpop.permute.xlu0 %335
      %337 = vrot.lane.b32.xlu0 %v301, 4
      %v338 = vpop.permute.xlu0 %337
      %339 = vrot.lane.b32.xlu0 %v302, 4
      %v340 = vpop.permute.xlu0 %339
      %341 = vrot.lane.b32.xlu0 %v303, 4
      %v342 = vpop.permute.xlu0 %341
      %343 = vrot.lane.b32.xlu0 %v304, 4
      %v344 = vpop.permute.xlu0 %343
      %345 = vrot.lane.b32.xlu0 %v305, 4
      %v346 = vpop.permute.xlu0 %345
      %347 = vrot.lane.b32.xlu0 %v306, 4
      %v348 = vpop.permute.xlu0 %347
      %349 = vrot.lane.b32.xlu0 %v307, 4
      %v350 = vpop.permute.xlu0 %349
      %351 = vrot.lane.b32.xlu0 %v308, 4
      %v352 = vpop.permute.xlu0 %351
      %353 = vrot.lane.b32.xlu0 %v309, 4
      %v354 = vpop.permute.xlu0 %353
      %355 = vrot.lane.b32.xlu0 %v310, 4
      %v356 = vpop.permute.xlu0 %355
      %357 = vrot.lane.b32.xlu0 %v311, 4
      %v358 = vpop.permute.xlu0 %357
      %359 = vrot.lane.b32.xlu0 %v312, 4
      %v360 = vpop.permute.xlu0 %359
      %vm377 = vcmask 64544
      %378 = vst.msk [vmem:[#allocation3] sm:$0xff] %vm377, %v330
      %379 = vst.msk [vmem:[#allocation3 + $0x8] sm:$0xff] %vm377, %v332
      %380 = vst.msk [vmem:[#allocation3 + $0x10] sm:$0xff] %vm377, %v334
      %381 = vst.msk [vmem:[#allocation3 + $0x18] sm:$0xff] %vm377, %v336
      %382 = vst.msk [vmem:[#allocation3 + $0x20] sm:$0xff] %vm377, %v338
      %383 = vst.msk [vmem:[#allocation3 + $0x28] sm:$0xff] %vm377, %v340
      %384 = vst.msk [vmem:[#allocation3 + $0x30] sm:$0xff] %vm377, %v342
      %385 = vst.msk [vmem:[#allocation3 + $0x38] sm:$0xff] %vm377, %v344
      %386 = vst.msk [vmem:[#allocation3 + $0x40] sm:$0xff] %vm377, %v346
      %387 = vst.msk [vmem:[#allocation3 + $0x48] sm:$0xff] %vm377, %v348
      %388 = vst.msk [vmem:[#allocation3 + $0x50] sm:$0xff] %vm377, %v350
      %389 = vst.msk [vmem:[#allocation3 + $0x58] sm:$0xff] %vm377, %v352
      %390 = vst.msk [vmem:[#allocation3 + $0x60] sm:$0xff] %vm377, %v354
      %391 = vst.msk [vmem:[#allocation3 + $0x68] sm:$0xff] %vm377, %v356
      %392 = vst.msk [vmem:[#allocation3 + $0x70] sm:$0xff] %vm377, %v358
      %393 = vst.msk [vmem:[#allocation3 + $0x78] sm:$0xff] %vm377, %v360
      %v394 = vld [vmem:[#allocation2 + $0x2] sm:$0xff]
      %v395 = vld [vmem:[#allocation2 + $0xa] sm:$0xff]
      %v396 = vld [vmem:[#allocation2 + $0x1a] sm:$0xff]
      %v397 = vld [vmem:[#allocation2 + $0x22] sm:$0xff]
      %v398 = vld [vmem:[#allocation2 + $0x32] sm:$0xff]
      %v399 = vld [vmem:[#allocation2 + $0x3a] sm:$0xff]
      %v400 = vld [vmem:[#allocation2 + $0x4a] sm:$0xff]
      %v401 = vld [vmem:[#allocation2 + $0x52] sm:$0xff]
      %v402 = vld [vmem:[#allocation2 + $0x62] sm:$0xff]
      %v403 = vld [vmem:[#allocation2 + $0x6a] sm:$0xff]
      %v404 = vld [vmem:[#allocation2 + $0x7a] sm:$0xff]
      %v405 = vld [vmem:[#allocation2 + $0x82] sm:$0xff]
      %v406 = vld [vmem:[#allocation2 + $0x92] sm:$0xff]
      %v407 = vld [vmem:[#allocation2 + $0x9a] sm:$0xff]
      %v408 = vld [vmem:[#allocation2 + $0xaa] sm:$0xff]
      %v409 = vld [vmem:[#allocation2 + $0xb2] sm:$0xff]
      %426 = vrot.lane.b32.xlu0 %v394, 8
      %v427 = vpop.permute.xlu0 %426
      %428 = vrot.lane.b32.xlu0 %v395, 8
      %v429 = vpop.permute.xlu0 %428
      %430 = vrot.lane.b32.xlu0 %v396, 8
      %v431 = vpop.permute.xlu0 %430
      %432 = vrot.lane.b32.xlu0 %v397, 8
      %v433 = vpop.permute.xlu0 %432
      %434 = vrot.lane.b32.xlu0 %v398, 8
      %v435 = vpop.permute.xlu0 %434
      %436 = vrot.lane.b32.xlu0 %v399, 8
      %v437 = vpop.permute.xlu0 %436
      %438 = vrot.lane.b32.xlu0 %v400, 8
      %v439 = vpop.permute.xlu0 %438
      %440 = vrot.lane.b32.xlu0 %v401, 8
      %v441 = vpop.permute.xlu0 %440
      %442 = vrot.lane.b32.xlu0 %v402, 8
      %v443 = vpop.permute.xlu0 %442
      %444 = vrot.lane.b32.xlu0 %v403, 8
      %v445 = vpop.permute.xlu0 %444
      %446 = vrot.lane.b32.xlu0 %v404, 8
      %v447 = vpop.permute.xlu0 %446
      %448 = vrot.lane.b32.xlu0 %v405, 8
      %v449 = vpop.permute.xlu0 %448
      %450 = vrot.lane.b32.xlu0 %v406, 8
      %v451 = vpop.permute.xlu0 %450
      %452 = vrot.lane.b32.xlu0 %v407, 8
      %v453 = vpop.permute.xlu0 %452
      %454 = vrot.lane.b32.xlu0 %v408, 8
      %v455 = vpop.permute.xlu0 %454
      %456 = vrot.lane.b32.xlu0 %v409, 8
      %v457 = vpop.permute.xlu0 %456
      %vm474 = vcmask 97344
      %475 = vst.msk [vmem:[#allocation3] sm:$0xff] %vm474, %v427
      %476 = vst.msk [vmem:[#allocation3 + $0x8] sm:$0xff] %vm474, %v429
      %477 = vst.msk [vmem:[#allocation3 + $0x10] sm:$0xff] %vm474, %v431
      %478 = vst.msk [vmem:[#allocation3 + $0x18] sm:$0xff] %vm474, %v433
      %479 = vst.msk [vmem:[#allocation3 + $0x20] sm:$0xff] %vm474, %v435
      %480 = vst.msk [vmem:[#allocation3 + $0x28] sm:$0xff] %vm474, %v437
      %481 = vst.msk [vmem:[#allocation3 + $0x30] sm:$0xff] %vm474, %v439
      %482 = vst.msk [vmem:[#allocation3 + $0x38] sm:$0xff] %vm474, %v441
      %483 = vst.msk [vmem:[#allocation3 + $0x40] sm:$0xff] %vm474, %v443
      %484 = vst.msk [vmem:[#allocation3 + $0x48] sm:$0xff] %vm474, %v445
      %485 = vst.msk [vmem:[#allocation3 + $0x50] sm:$0xff] %vm474, %v447
      %486 = vst.msk [vmem:[#allocation3 + $0x58] sm:$0xff] %vm474, %v449
      %487 = vst.msk [vmem:[#allocation3 + $0x60] sm:$0xff] %vm474, %v451
      %488 = vst.msk [vmem:[#allocation3 + $0x68] sm:$0xff] %vm474, %v453
      %489 = vst.msk [vmem:[#allocation3 + $0x70] sm:$0xff] %vm474, %v455
      %490 = vst.msk [vmem:[#allocation3 + $0x78] sm:$0xff] %vm474, %v457
      %s491 = scalar_lea.vmem [#allocation2], 24
      %v492 = vld [vmem:[%s491] sm:$0xff]
      %v493 = vld [vmem:[%s491 + $0x8] sm:$0xff]
      %v494 = vld [vmem:[%s491 + $0x18] sm:$0xff]
      %v495 = vld [vmem:[%s491 + $0x20] sm:$0xff]
      %v496 = vld [vmem:[%s491 + $0x30] sm:$0xff]
      %v497 = vld [vmem:[%s491 + $0x38] sm:$0xff]
      %v498 = vld [vmem:[%s491 + $0x48] sm:$0xff]
      %v499 = vld [vmem:[%s491 + $0x50] sm:$0xff]
      %v500 = vld [vmem:[%s491 + $0x60] sm:$0xff]
      %v501 = vld [vmem:[%s491 + $0x68] sm:$0xff]
      %v502 = vld [vmem:[%s491 + $0x78] sm:$0xff]
      %v503 = vld [vmem:[%s491 + $0x80] sm:$0xff]
      %v504 = vld [vmem:[%s491 + $0x90] sm:$0xff]
      %v505 = vld [vmem:[%s491 + $0x98] sm:$0xff]
      %v506 = vld [vmem:[%s491 + $0xa8] sm:$0xff]
      %v507 = vld [vmem:[%s491 + $0xb0] sm:$0xff]
      %524 = vrot.lane.b32.xlu0 %v492, 12
      %v525 = vpop.permute.xlu0 %524
      %526 = vrot.lane.b32.xlu0 %v493, 12
      %v527 = vpop.permute.xlu0 %526
      %528 = vrot.lane.b32.xlu0 %v494, 12
      %v529 = vpop.permute.xlu0 %528
      %530 = vrot.lane.b32.xlu0 %v495, 12
      %v531 = vpop.permute.xlu0 %530
      %532 = vrot.lane.b32.xlu0 %v496, 12
      %v533 = vpop.permute.xlu0 %532
      %534 = vrot.lane.b32.xlu0 %v497, 12
      %v535 = vpop.permute.xlu0 %534
      %536 = vrot.lane.b32.xlu0 %v498, 12
      %v537 = vpop.permute.xlu0 %536
      %538 = vrot.lane.b32.xlu0 %v499, 12
      %v539 = vpop.permute.xlu0 %538
      %540 = vrot.lane.b32.xlu0 %v500, 12
      %v541 = vpop.permute.xlu0 %540
      %542 = vrot.lane.b32.xlu0 %v501, 12
      %v543 = vpop.permute.xlu0 %542
      %544 = vrot.lane.b32.xlu0 %v502, 12
      %v545 = vpop.permute.xlu0 %544
      %546 = vrot.lane.b32.xlu0 %v503, 12
      %v547 = vpop.permute.xlu0 %546
      %548 = vrot.lane.b32.xlu0 %v504, 12
      %v549 = vpop.permute.xlu0 %548
      %550 = vrot.lane.b32.xlu0 %v505, 12
      %v551 = vpop.permute.xlu0 %550
      %552 = vrot.lane.b32.xlu0 %v506, 12
      %v553 = vpop.permute.xlu0 %552
      %554 = vrot.lane.b32.xlu0 %v507, 12
      %v555 = vpop.permute.xlu0 %554
      %vm572 = vcmask 130144
      %573 = vst.msk [vmem:[#allocation3] sm:$0xff] %vm572, %v525
      %574 = vst.msk [vmem:[#allocation3 + $0x8] sm:$0xff] %vm572, %v527
      %575 = vst.msk [vmem:[#allocation3 + $0x10] sm:$0xff] %vm572, %v529
      %576 = vst.msk [vmem:[#allocation3 + $0x18] sm:$0xff] %vm572, %v531
      %577 = vst.msk [vmem:[#allocation3 + $0x20] sm:$0xff] %vm572, %v533
      %578 = vst.msk [vmem:[#allocation3 + $0x28] sm:$0xff] %vm572, %v535
      %579 = vst.msk [vmem:[#allocation3 + $0x30] sm:$0xff] %vm572, %v537
      %580 = vst.msk [vmem:[#allocation3 + $0x38] sm:$0xff] %vm572, %v539
      %581 = vst.msk [vmem:[#allocation3 + $0x40] sm:$0xff] %vm572, %v541
      %582 = vst.msk [vmem:[#allocation3 + $0x48] sm:$0xff] %vm572, %v543
      %583 = vst.msk [vmem:[#allocation3 + $0x50] sm:$0xff] %vm572, %v545
      %584 = vst.msk [vmem:[#allocation3 + $0x58] sm:$0xff] %vm572, %v547
      %585 = vst.msk [vmem:[#allocation3 + $0x60] sm:$0xff] %vm572, %v549
      %586 = vst.msk [vmem:[#allocation3 + $0x68] sm:$0xff] %vm572, %v551
      %587 = vst.msk [vmem:[#allocation3 + $0x70] sm:$0xff] %vm572, %v553
      %588 = vst.msk [vmem:[#allocation3 + $0x78] sm:$0xff] %vm572, %v555
      %v589 = vld [vmem:[%s491 + $0x1] sm:$0xff]
      %v590 = vld [vmem:[%s491 + $0x9] sm:$0xff]
      %v591 = vld [vmem:[%s491 + $0x19] sm:$0xff]
      %v592 = vld [vmem:[%s491 + $0x21] sm:$0xff]
      %v593 = vld [vmem:[%s491 + $0x31] sm:$0xff]
      %v594 = vld [vmem:[%s491 + $0x39] sm:$0xff]
      %v595 = vld [vmem:[%s491 + $0x49] sm:$0xff]
      %v596 = vld [vmem:[%s491 + $0x51] sm:$0xff]
      %v597 = vld [vmem:[%s491 + $0x61] sm:$0xff]
      %v598 = vld [vmem:[%s491 + $0x69] sm:$0xff]
      %v599 = vld [vmem:[%s491 + $0x79] sm:$0xff]
      %v600 = vld [vmem:[%s491 + $0x81] sm:$0xff]
      %v601 = vld [vmem:[%s491 + $0x91] sm:$0xff]
      %v602 = vld [vmem:[%s491 + $0x99] sm:$0xff]
      %v603 = vld [vmem:[%s491 + $0xa9] sm:$0xff]
      %v604 = vld [vmem:[%s491 + $0xb1] sm:$0xff]
      %621 = vrot.lane.b32.xlu0 %v589, 16
      %v622 = vpop.permute.xlu0 %621
      %623 = vrot.lane.b32.xlu0 %v590, 16
      %v624 = vpop.permute.xlu0 %623
      %625 = vrot.lane.b32.xlu0 %v591, 16
      %v626 = vpop.permute.xlu0 %625
      %627 = vrot.lane.b32.xlu0 %v592, 16
      %v628 = vpop.permute.xlu0 %627
      %629 = vrot.lane.b32.xlu0 %v593, 16
      %v630 = vpop.permute.xlu0 %629
      %631 = vrot.lane.b32.xlu0 %v594, 16
      %v632 = vpop.permute.xlu0 %631
      %633 = vrot.lane.b32.xlu0 %v595, 16
      %v634 = vpop.permute.xlu0 %633
      %635 = vrot.lane.b32.xlu0 %v596, 16
      %v636 = vpop.permute.xlu0 %635
      %637 = vrot.lane.b32.xlu0 %v597, 16
      %v638 = vpop.permute.xlu0 %637
      %639 = vrot.lane.b32.xlu0 %v598, 16
      %v640 = vpop.permute.xlu0 %639
      %641 = vrot.lane.b32.xlu0 %v599, 16
      %v642 = vpop.permute.xlu0 %641
      %643 = vrot.lane.b32.xlu0 %v600, 16
      %v644 = vpop.permute.xlu0 %643
      %645 = vrot.lane.b32.xlu0 %v601, 16
      %v646 = vpop.permute.xlu0 %645
      %647 = vrot.lane.b32.xlu0 %v602, 16
      %v648 = vpop.permute.xlu0 %647
      %649 = vrot.lane.b32.xlu0 %v603, 16
      %v650 = vpop.permute.xlu0 %649
      %651 = vrot.lane.b32.xlu0 %v604, 16
      %v652 = vpop.permute.xlu0 %651
      %vm669 = vcmask 162944
      %670 = vst.msk [vmem:[#allocation3] sm:$0xff] %vm669, %v622
      %671 = vst.msk [vmem:[#allocation3 + $0x8] sm:$0xff] %vm669, %v624
      %672 = vst.msk [vmem:[#allocation3 + $0x10] sm:$0xff] %vm669, %v626
      %673 = vst.msk [vmem:[#allocation3 + $0x18] sm:$0xff] %vm669, %v628
      %674 = vst.msk [vmem:[#allocation3 + $0x20] sm:$0xff] %vm669, %v630
      %675 = vst.msk [vmem:[#allocation3 + $0x28] sm:$0xff] %vm669, %v632
      %676 = vst.msk [vmem:[#allocation3 + $0x30] sm:$0xff] %vm669, %v634
      %677 = vst.msk [vmem:[#allocation3 + $0x38] sm:$0xff] %vm669, %v636
      %678 = vst.msk [vmem:[#allocation3 + $0x40] sm:$0xff] %vm669, %v638
      %679 = vst.msk [vmem:[#allocation3 + $0x48] sm:$0xff] %vm669, %v640
      %680 = vst.msk [vmem:[#allocation3 + $0x50] sm:$0xff] %vm669, %v642
      %681 = vst.msk [vmem:[#allocation3 + $0x58] sm:$0xff] %vm669, %v644
      %682 = vst.msk [vmem:[#allocation3 + $0x60] sm:$0xff] %vm669, %v646
      %683 = vst.msk [vmem:[#allocation3 + $0x68] sm:$0xff] %vm669, %v648
      %684 = vst.msk [vmem:[#allocation3 + $0x70] sm:$0xff] %vm669, %v650
      %685 = vst.msk [vmem:[#allocation3 + $0x78] sm:$0xff] %vm669, %v652
      %v686 = vld [vmem:[%s491 + $0x2] sm:$0xff]
      %v687 = vld [vmem:[%s491 + $0xa] sm:$0xff]
      %v688 = vld [vmem:[%s491 + $0x1a] sm:$0xff]
      %v689 = vld [vmem:[%s491 + $0x22] sm:$0xff]
      %v690 = vld [vmem:[%s491 + $0x32] sm:$0xff]
      %v691 = vld [vmem:[%s491 + $0x3a] sm:$0xff]
      %v692 = vld [vmem:[%s491 + $0x4a] sm:$0xff]
      %v693 = vld [vmem:[%s491 + $0x52] sm:$0xff]
      %v694 = vld [vmem:[%s491 + $0x62] sm:$0xff]
      %v695 = vld [vmem:[%s491 + $0x6a] sm:$0xff]
      %v696 = vld [vmem:[%s491 + $0x7a] sm:$0xff]
      %v697 = vld [vmem:[%s491 + $0x82] sm:$0xff]
      %v698 = vld [vmem:[%s491 + $0x92] sm:$0xff]
      %v699 = vld [vmem:[%s491 + $0x9a] sm:$0xff]
      %v700 = vld [vmem:[%s491 + $0xaa] sm:$0xff]
      %v701 = vld [vmem:[%s491 + $0xb2] sm:$0xff]
      %718 = vrot.lane.b32.xlu0 %v686, 20
      %v719 = vpop.permute.xlu0 %718
      %720 = vrot.lane.b32.xlu0 %v687, 20
      %v721 = vpop.permute.xlu0 %720
      %722 = vrot.lane.b32.xlu0 %v688, 20
      %v723 = vpop.permute.xlu0 %722
      %724 = vrot.lane.b32.xlu0 %v689, 20
      %v725 = vpop.permute.xlu0 %724
      %726 = vrot.lane.b32.xlu0 %v690, 20
      %v727 = vpop.permute.xlu0 %726
      %728 = vrot.lane.b32.xlu0 %v691, 20
      %v729 = vpop.permute.xlu0 %728
      %730 = vrot.lane.b32.xlu0 %v692, 20
      %v731 = vpop.permute.xlu0 %730
      %732 = vrot.lane.b32.xlu0 %v693, 20
      %v733 = vpop.permute.xlu0 %732
      %734 = vrot.lane.b32.xlu0 %v694, 20
      %v735 = vpop.permute.xlu0 %734
      %736 = vrot.lane.b32.xlu0 %v695, 20
      %v737 = vpop.permute.xlu0 %736
      %738 = vrot.lane.b32.xlu0 %v696, 20
      %v739 = vpop.permute.xlu0 %738
      %740 = vrot.lane.b32.xlu0 %v697, 20
      %v741 = vpop.permute.xlu0 %740
      %742 = vrot.lane.b32.xlu0 %v698, 20
      %v743 = vpop.permute.xlu0 %742
      %744 = vrot.lane.b32.xlu0 %v699, 20
      %v745 = vpop.permute.xlu0 %744
      %746 = vrot.lane.b32.xlu0 %v700, 20
      %v747 = vpop.permute.xlu0 %746
      %748 = vrot.lane.b32.xlu0 %v701, 20
      %v749 = vpop.permute.xlu0 %748
      %vm766 = vcmask 195744
      %767 = vst.msk [vmem:[#allocation3] sm:$0xff] %vm766, %v719
      %768 = vst.msk [vmem:[#allocation3 + $0x8] sm:$0xff] %vm766, %v721
      %769 = vst.msk [vmem:[#allocation3 + $0x10] sm:$0xff] %vm766, %v723
      %770 = vst.msk [vmem:[#allocation3 + $0x18] sm:$0xff] %vm766, %v725
      %771 = vst.msk [vmem:[#allocation3 + $0x20] sm:$0xff] %vm766, %v727
      %772 = vst.msk [vmem:[#allocation3 + $0x28] sm:$0xff] %vm766, %v729
      %773 = vst.msk [vmem:[#allocation3 + $0x30] sm:$0xff] %vm766, %v731
      %774 = vst.msk [vmem:[#allocation3 + $0x38] sm:$0xff] %vm766, %v733
      %775 = vst.msk [vmem:[#allocation3 + $0x40] sm:$0xff] %vm766, %v735
      %776 = vst.msk [vmem:[#allocation3 + $0x48] sm:$0xff] %vm766, %v737
      %777 = vst.msk [vmem:[#allocation3 + $0x50] sm:$0xff] %vm766, %v739
      %778 = vst.msk [vmem:[#allocation3 + $0x58] sm:$0xff] %vm766, %v741
      %779 = vst.msk [vmem:[#allocation3 + $0x60] sm:$0xff] %vm766, %v743
      %780 = vst.msk [vmem:[#allocation3 + $0x68] sm:$0xff] %vm766, %v745
      %781 = vst.msk [vmem:[#allocation3 + $0x70] sm:$0xff] %vm766, %v747
      %782 = vst.msk [vmem:[#allocation3 + $0x78] sm:$0xff] %vm766, %v749
      %s783 = scalar_lea.vmem [#allocation2], 48
      %v784 = vld [vmem:[%s783] sm:$0xff]
      %v785 = vld [vmem:[%s783 + $0x8] sm:$0xff]
      %v786 = vld [vmem:[%s783 + $0x18] sm:$0xff]
      %v787 = vld [vmem:[%s783 + $0x20] sm:$0xff]
      %v788 = vld [vmem:[%s783 + $0x30] sm:$0xff]
      %v789 = vld [vmem:[%s783 + $0x38] sm:$0xff]
      %v790 = vld [vmem:[%s783 + $0x48] sm:$0xff]
      %v791 = vld [vmem:[%s783 + $0x50] sm:$0xff]
      %v792 = vld [vmem:[%s783 + $0x60] sm:$0xff]
      %v793 = vld [vmem:[%s783 + $0x68] sm:$0xff]
      %v794 = vld [vmem:[%s783 + $0x78] sm:$0xff]
      %v795 = vld [vmem:[%s783 + $0x80] sm:$0xff]
      %v796 = vld [vmem:[%s783 + $0x90] sm:$0xff]
      %v797 = vld [vmem:[%s783 + $0x98] sm:$0xff]
      %v798 = vld [vmem:[%s783 + $0xa8] sm:$0xff]
      %v799 = vld [vmem:[%s783 + $0xb0] sm:$0xff]
      %816 = vrot.lane.b32.xlu0 %v784, 24
      %v817 = vpop.permute.xlu0 %816
      %818 = vrot.lane.b32.xlu0 %v785, 24
      %v819 = vpop.permute.xlu0 %818
      %820 = vrot.lane.b32.xlu0 %v786, 24
      %v821 = vpop.permute.xlu0 %820
      %822 = vrot.lane.b32.xlu0 %v787, 24
      %v823 = vpop.permute.xlu0 %822
      %824 = vrot.lane.b32.xlu0 %v788, 24
      %v825 = vpop.permute.xlu0 %824
      %826 = vrot.lane.b32.xlu0 %v789, 24
      %v827 = vpop.permute.xlu0 %826
      %828 = vrot.lane.b32.xlu0 %v790, 24
      %v829 = vpop.permute.xlu0 %828
      %830 = vrot.lane.b32.xlu0 %v791, 24
      %v831 = vpop.permute.xlu0 %830
      %832 = vrot.lane.b32.xlu0 %v792, 24
      %v833 = vpop.permute.xlu0 %832
      %834 = vrot.lane.b32.xlu0 %v793, 24
      %v835 = vpop.permute.xlu0 %834
      %836 = vrot.lane.b32.xlu0 %v794, 24
      %v837 = vpop.permute.xlu0 %836
      %838 = vrot.lane.b32.xlu0 %v795, 24
      %v839 = vpop.permute.xlu0 %838
      %840 = vrot.lane.b32.xlu0 %v796, 24
      %v841 = vpop.permute.xlu0 %840
      %842 = vrot.lane.b32.xlu0 %v797, 24
      %v843 = vpop.permute.xlu0 %842
      %844 = vrot.lane.b32.xlu0 %v798, 24
      %v845 = vpop.permute.xlu0 %844
      %846 = vrot.lane.b32.xlu0 %v799, 24
      %v847 = vpop.permute.xlu0 %846
      %vm864 = vcmask 228544
      %865 = vst.msk [vmem:[#allocation3] sm:$0xff] %vm864, %v817
      %866 = vst.msk [vmem:[#allocation3 + $0x8] sm:$0xff] %vm864, %v819
      %867 = vst.msk [vmem:[#allocation3 + $0x10] sm:$0xff] %vm864, %v821
      %868 = vst.msk [vmem:[#allocation3 + $0x18] sm:$0xff] %vm864, %v823
      %869 = vst.msk [vmem:[#allocation3 + $0x20] sm:$0xff] %vm864, %v825
      %870 = vst.msk [vmem:[#allocation3 + $0x28] sm:$0xff] %vm864, %v827
      %871 = vst.msk [vmem:[#allocation3 + $0x30] sm:$0xff] %vm864, %v829
      %872 = vst.msk [vmem:[#allocation3 + $0x38] sm:$0xff] %vm864, %v831
      %873 = vst.msk [vmem:[#allocation3 + $0x40] sm:$0xff] %vm864, %v833
      %874 = vst.msk [vmem:[#allocation3 + $0x48] sm:$0xff] %vm864, %v835
      %875 = vst.msk [vmem:[#allocation3 + $0x50] sm:$0xff] %vm864, %v837
      %876 = vst.msk [vmem:[#allocation3 + $0x58] sm:$0xff] %vm864, %v839
      %877 = vst.msk [vmem:[#allocation3 + $0x60] sm:$0xff] %vm864, %v841
      %878 = vst.msk [vmem:[#allocation3 + $0x68] sm:$0xff] %vm864, %v843
      %879 = vst.msk [vmem:[#allocation3 + $0x70] sm:$0xff] %vm864, %v845
      %880 = vst.msk [vmem:[#allocation3 + $0x78] sm:$0xff] %vm864, %v847
      %v881 = vld [vmem:[%s783 + $0x1] sm:$0xff]
      %v882 = vld [vmem:[%s783 + $0x9] sm:$0xff]
      %v883 = vld [vmem:[%s783 + $0x19] sm:$0xff]
      %v884 = vld [vmem:[%s783 + $0x21] sm:$0xff]
      %v885 = vld [vmem:[%s783 + $0x31] sm:$0xff]
      %v886 = vld [vmem:[%s783 + $0x39] sm:$0xff]
      %v887 = vld [vmem:[%s783 + $0x49] sm:$0xff]
      %v888 = vld [vmem:[%s783 + $0x51] sm:$0xff]
      %v889 = vld [vmem:[%s783 + $0x61] sm:$0xff]
      %v890 = vld [vmem:[%s783 + $0x69] sm:$0xff]
      %v891 = vld [vmem:[%s783 + $0x79] sm:$0xff]
      %v892 = vld [vmem:[%s783 + $0x81] sm:$0xff]
      %v893 = vld [vmem:[%s783 + $0x91] sm:$0xff]
      %v894 = vld [vmem:[%s783 + $0x99] sm:$0xff]
      %v895 = vld [vmem:[%s783 + $0xa9] sm:$0xff]
      %v896 = vld [vmem:[%s783 + $0xb1] sm:$0xff]
      %913 = vrot.lane.b32.xlu0 %v881, 28
      %v914 = vpop.permute.xlu0 %913
      %915 = vrot.lane.b32.xlu0 %v882, 28
      %v916 = vpop.permute.xlu0 %915
      %917 = vrot.lane.b32.xlu0 %v883, 28
      %v918 = vpop.permute.xlu0 %917
      %919 = vrot.lane.b32.xlu0 %v884, 28
      %v920 = vpop.permute.xlu0 %919
      %921 = vrot.lane.b32.xlu0 %v885, 28
      %v922 = vpop.permute.xlu0 %921
      %923 = vrot.lane.b32.xlu0 %v886, 28
      %v924 = vpop.permute.xlu0 %923
      %925 = vrot.lane.b32.xlu0 %v887, 28
      %v926 = vpop.permute.xlu0 %925
      %927 = vrot.lane.b32.xlu0 %v888, 28
      %v928 = vpop.permute.xlu0 %927
      %929 = vrot.lane.b32.xlu0 %v889, 28
      %v930 = vpop.permute.xlu0 %929
      %931 = vrot.lane.b32.xlu0 %v890, 28
      %v932 = vpop.permute.xlu0 %931
      %933 = vrot.lane.b32.xlu0 %v891, 28
      %v934 = vpop.permute.xlu0 %933
      %935 = vrot.lane.b32.xlu0 %v892, 28
      %v936 = vpop.permute.xlu0 %935
      %937 = vrot.lane.b32.xlu0 %v893, 28
      %v938 = vpop.permute.xlu0 %937
      %939 = vrot.lane.b32.xlu0 %v894, 28
      %v940 = vpop.permute.xlu0 %939
      %941 = vrot.lane.b32.xlu0 %v895, 28
      %v942 = vpop.permute.xlu0 %941
      %943 = vrot.lane.b32.xlu0 %v896, 28
      %v944 = vpop.permute.xlu0 %943
      %vm961 = vcmask 261344
      %962 = vst.msk [vmem:[#allocation3] sm:$0xff] %vm961, %v914
      %963 = vst.msk [vmem:[#allocation3 + $0x8] sm:$0xff] %vm961, %v916
      %964 = vst.msk [vmem:[#allocation3 + $0x10] sm:$0xff] %vm961, %v918
      %965 = vst.msk [vmem:[#allocation3 + $0x18] sm:$0xff] %vm961, %v920
      %966 = vst.msk [vmem:[#allocation3 + $0x20] sm:$0xff] %vm961, %v922
      %967 = vst.msk [vmem:[#allocation3 + $0x28] sm:$0xff] %vm961, %v924
      %968 = vst.msk [vmem:[#allocation3 + $0x30] sm:$0xff] %vm961, %v926
      %969 = vst.msk [vmem:[#allocation3 + $0x38] sm:$0xff] %vm961, %v928
      %970 = vst.msk [vmem:[#allocation3 + $0x40] sm:$0xff] %vm961, %v930
      %971 = vst.msk [vmem:[#allocation3 + $0x48] sm:$0xff] %vm961, %v932
      %972 = vst.msk [vmem:[#allocation3 + $0x50] sm:$0xff] %vm961, %v934
      %973 = vst.msk [vmem:[#allocation3 + $0x58] sm:$0xff] %vm961, %v936
      %974 = vst.msk [vmem:[#allocation3 + $0x60] sm:$0xff] %vm961, %v938
      %975 = vst.msk [vmem:[#allocation3 + $0x68] sm:$0xff] %vm961, %v940
      %976 = vst.msk [vmem:[#allocation3 + $0x70] sm:$0xff] %vm961, %v942
      %977 = vst.msk [vmem:[#allocation3 + $0x78] sm:$0xff] %vm961, %v944
      %v978 = vld [vmem:[%s783 + $0x2] sm:$0xff]
      %v979 = vld [vmem:[%s783 + $0xa] sm:$0xff]
      %v980 = vld [vmem:[%s783 + $0x1a] sm:$0xff]
      %v981 = vld [vmem:[%s783 + $0x22] sm:$0xff]
      %v982 = vld [vmem:[%s783 + $0x32] sm:$0xff]
      %v983 = vld [vmem:[%s783 + $0x3a] sm:$0xff]
      %v984 = vld [vmem:[%s783 + $0x4a] sm:$0xff]
      %v985 = vld [vmem:[%s783 + $0x52] sm:$0xff]
      %v986 = vld [vmem:[%s783 + $0x62] sm:$0xff]
      %v987 = vld [vmem:[%s783 + $0x6a] sm:$0xff]
      %v988 = vld [vmem:[%s783 + $0x7a] sm:$0xff]
      %v989 = vld [vmem:[%s783 + $0x82] sm:$0xff]
      %v990 = vld [vmem:[%s783 + $0x92] sm:$0xff]
      %v991 = vld [vmem:[%s783 + $0x9a] sm:$0xff]
      %v992 = vld [vmem:[%s783 + $0xaa] sm:$0xff]
      %v993 = vld [vmem:[%s783 + $0xb2] sm:$0xff]
      %1010 = vrot.lane.b32.xlu0 %v978, 32
      %v1011 = vpop.permute.xlu0 %1010
      %1012 = vrot.lane.b32.xlu0 %v979, 32
      %v1013 = vpop.permute.xlu0 %1012
      %1014 = vrot.lane.b32.xlu0 %v980, 32
      %v1015 = vpop.permute.xlu0 %1014
      %1016 = vrot.lane.b32.xlu0 %v981, 32
      %v1017 = vpop.permute.xlu0 %1016
      %1018 = vrot.lane.b32.xlu0 %v982, 32
      %v1019 = vpop.permute.xlu0 %1018
      %1020 = vrot.lane.b32.xlu0 %v983, 32
      %v1021 = vpop.permute.xlu0 %1020
      %1022 = vrot.lane.b32.xlu0 %v984, 32
      %v1023 = vpop.permute.xlu0 %1022
      %1024 = vrot.lane.b32.xlu0 %v985, 32
      %v1025 = vpop.permute.xlu0 %1024
      %1026 = vrot.lane.b32.xlu0 %v986, 32
      %v1027 = vpop.permute.xlu0 %1026
      %1028 = vrot.lane.b32.xlu0 %v987, 32
      %v1029 = vpop.permute.xlu0 %1028
      %1030 = vrot.lane.b32.xlu0 %v988, 32
      %v1031 = vpop.permute.xlu0 %1030
      %1032 = vrot.lane.b32.xlu0 %v989, 32
      %v1033 = vpop.permute.xlu0 %1032
      %1034 = vrot.lane.b32.xlu0 %v990, 32
      %v1035 = vpop.permute.xlu0 %1034
      %1036 = vrot.lane.b32.xlu0 %v991, 32
      %v1037 = vpop.permute.xlu0 %1036
      %1038 = vrot.lane.b32.xlu0 %v992, 32
      %v1039 = vpop.permute.xlu0 %1038
      %1040 = vrot.lane.b32.xlu0 %v993, 32
      %v1041 = vpop.permute.xlu0 %1040
      %vm1058 = vcmask 294144
      %1059 = vst.msk [vmem:[#allocation3] sm:$0xff] %vm1058, %v1011
      %1060 = vst.msk [vmem:[#allocation3 + $0x8] sm:$0xff] %vm1058, %v1013
      %1061 = vst.msk [vmem:[#allocation3 + $0x10] sm:$0xff] %vm1058, %v1015
      %1062 = vst.msk [vmem:[#allocation3 + $0x18] sm:$0xff] %vm1058, %v1017
      %1063 = vst.msk [vmem:[#allocation3 + $0x20] sm:$0xff] %vm1058, %v1019
      %1064 = vst.msk [vmem:[#allocation3 + $0x28] sm:$0xff] %vm1058, %v1021
      %1065 = vst.msk [vmem:[#allocation3 + $0x30] sm:$0xff] %vm1058, %v1023
      %1066 = vst.msk [vmem:[#allocation3 + $0x38] sm:$0xff] %vm1058, %v1025
      %1067 = vst.msk [vmem:[#allocation3 + $0x40] sm:$0xff] %vm1058, %v1027
      %1068 = vst.msk [vmem:[#allocation3 + $0x48] sm:$0xff] %vm1058, %v1029
      %1069 = vst.msk [vmem:[#allocation3 + $0x50] sm:$0xff] %vm1058, %v1031
      %1070 = vst.msk [vmem:[#allocation3 + $0x58] sm:$0xff] %vm1058, %v1033
      %1071 = vst.msk [vmem:[#allocation3 + $0x60] sm:$0xff] %vm1058, %v1035
      %1072 = vst.msk [vmem:[#allocation3 + $0x68] sm:$0xff] %vm1058, %v1037
      %1073 = vst.msk [vmem:[#allocation3 + $0x70] sm:$0xff] %vm1058, %v1039
      %1074 = vst.msk [vmem:[#allocation3 + $0x78] sm:$0xff] %vm1058, %v1041
      %v1075 = vld [vmem:[%s1] sm:$0xf]
      %v1076 = vunpack.c.l.bf16 %v1075
      %v1077 = vld [vmem:[#allocation3] sm:$0xff]
      %v1078 = vld [vmem:[#allocation3 + $0x8] sm:$0xff]
      %v1079 = vld [vmem:[#allocation3 + $0x10] sm:$0xff]
      %v1080 = vld [vmem:[#allocation3 + $0x18] sm:$0xff]
      %v1081 = vld [vmem:[#allocation3 + $0x20] sm:$0xff]
      %v1082 = vld [vmem:[#allocation3 + $0x28] sm:$0xff]
      %v1083 = vld [vmem:[#allocation3 + $0x30] sm:$0xff]
      %v1084 = vld [vmem:[#allocation3 + $0x38] sm:$0xff]
      %v1085 = vld [vmem:[#allocation3 + $0x40] sm:$0xff]
      %v1086 = vld [vmem:[#allocation3 + $0x48] sm:$0xff]
      %v1087 = vld [vmem:[#allocation3 + $0x50] sm:$0xff]
      %v1088 = vld [vmem:[#allocation3 + $0x58] sm:$0xff]
      %v1089 = vld [vmem:[#allocation3 + $0x60] sm:$0xff]
      %v1090 = vld [vmem:[#allocation3 + $0x68] sm:$0xff]
      %v1091 = vld [vmem:[#allocation3 + $0x70] sm:$0xff]
      %v1092 = vld [vmem:[#allocation3 + $0x78] sm:$0xff]
      %vm1093 = vcmask 293888
      %v1095 = vsel %vm1093, %v1076, 0
      %v1098 = vsel %vm1093, %v1077, 0
      %v1101 = vsel %vm1093, %v1078, 0
      %v1104 = vsel %vm1093, %v1079, 0
      %v1107 = vsel %vm1093, %v1080, 0
      %v1110 = vsel %vm1093, %v1081, 0
      %v1113 = vsel %vm1093, %v1082, 0
      %v1116 = vsel %vm1093, %v1083, 0
      %v1119 = vsel %vm1093, %v1084, 0
      %v1122 = vsel %vm1093, %v1085, 0
      %v1125 = vsel %vm1093, %v1086, 0
      %v1128 = vsel %vm1093, %v1087, 0
      %v1131 = vsel %vm1093, %v1088, 0
      %v1134 = vsel %vm1093, %v1089, 0
      %v1137 = vsel %vm1093, %v1090, 0
      %v1140 = vsel %vm1093, %v1091, 0
      %v1143 = vsel %vm1093, %v1092, 0
      %1145 = vmatprep.subr.mxu0 0.0
      %1146 = vmatpush1.xpose.msra.mxu0 %v1098
      %1147 = vmatprep.subr.mxu0 0.0
      %1148 = vmatpush1.xpose.msra.mxu0 %v1101
      %1149 = vmatprep.subr.mxu0 0.0
      %1150 = vmatpush1.xpose.msra.mxu0 %v1104
      %1151 = vmatprep.subr.mxu0 0.0
      %1152 = vmatpush1.xpose.msra.mxu0 %v1107
      %1153 = vmatprep.subr.mxu0 0.0
      %1154 = vmatpush1.xpose.msra.mxu0 %v1110
      %1155 = vmatprep.subr.mxu0 0.0
      %1156 = vmatpush1.xpose.msra.mxu0 %v1113
      %1157 = vmatprep.subr.mxu0 0.0
      %1158 = vmatpush1.xpose.msra.mxu0 %v1116
      %1159 = vmatprep.subr.mxu0 0.0
      %1160 = vmatpush1.xpose.msra.mxu0 %v1119
      %1161 = vmatprep.subr.mxu0 0.0
      %1162 = vmatpush1.xpose.msra.mxu0 %v1122
      %1163 = vmatprep.subr.mxu0 0.0
      %1164 = vmatpush1.xpose.msra.mxu0 %v1125
      %1165 = vmatprep.subr.mxu0 0.0
      %1166 = vmatpush1.xpose.msra.mxu0 %v1128
      %1167 = vmatprep.subr.mxu0 0.0
      %1168 = vmatpush1.xpose.msra.mxu0 %v1131
      %1169 = vmatprep.subr.mxu0 0.0
      %1170 = vmatpush1.xpose.msra.mxu0 %v1134
      %1171 = vmatprep.subr.mxu0 0.0
      %1172 = vmatpush1.xpose.msra.mxu0 %v1137
      %1173 = vmatprep.subr.mxu0 0.0
      %1174 = vmatpush1.xpose.msra.mxu0 %v1140
      %1175 = vmatprep.subr.mxu0 0.0
      %1176 = vmatpush1.xpose.msra.mxu0 %v1143
      %1177 = vmatprep.subr.mxu0 0.0
      %1178 = vmatpush1.xpose.msra.mxu0 0.0
      %1179 = vmatprep.subr.mxu0 0.0
      %1180 = vmatpush1.xpose.msra.mxu0 0.0
      %1181 = vmatprep.subr.mxu0 0.0
      %1182 = vmatpush1.xpose.msra.mxu0 0.0
      %1183 = vmatprep.subr.mxu0 0.0
      %1184 = vmatpush1.xpose.msra.mxu0 0.0
      %1185 = vmatprep.subr.mxu0 0.0
      %1186 = vmatpush1.xpose.msra.mxu0 0.0
      %1187 = vmatprep.subr.mxu0 0.0
      %1188 = vmatpush1.xpose.msra.mxu0 0.0
      %1189 = vmatprep.subr.mxu0 0.0
      %1190 = vmatpush1.xpose.msra.mxu0 0.0
      %1191 = vmatprep.subr.mxu0 0.0
      %1192 = vmatpush1.xpose.msra.mxu0 0.0
      %1193 = vmatprep.subr.mxu0 0.0
      %1194 = vmatpush1.xpose.msra.mxu0 0.0
      %1195 = vmatprep.subr.mxu0 0.0
      %1196 = vmatpush1.xpose.msra.mxu0 0.0
      %1197 = vmatprep.subr.mxu0 0.0
      %1198 = vmatpush1.xpose.msra.mxu0 0.0
      %1199 = vmatprep.subr.mxu0 0.0
      %1200 = vmatpush1.xpose.msra.mxu0 0.0
      %1201 = vmatprep.subr.mxu0 0.0
      %1202 = vmatpush1.xpose.msra.mxu0 0.0
      %1203 = vmatprep.subr.mxu0 0.0
      %1204 = vmatpush1.xpose.msra.mxu0 0.0
      %1205 = vmatprep.subr.mxu0 0.0
      %1206 = vmatpush1.xpose.msra.mxu0 0.0
      %1207 = vmatprep.subr.mxu0 0.0
      %1208 = vmatpush1.xpose.msra.mxu0 0.0
      %1209 = vmatprep.mubr.f32.mxu0 0.0
      %1210 = vmatmul.mubr.f32.gmra.mrb[0].mxu0 %v1095
      %v1211 = vpop.f32.mrb[0].mxu0
      %v1212 = vadd.f32 0.0, %v1211
      %v1213 = vpop.f32.mrb[0].mxu0
      %1214 = vdwg.mxu0
      %1215 = vadd.xlane.f32.xlu0 %v1212
      %v1216 = vpop.xlane.xlu0 %1215
      %v1217 = vmul.f32 %v1216, 0.0078125
      %v1218 = vsub.f32 %v1212, %v1217
      %v1219 = vmul.f32 %v1218, %v1218
      %1220 = vadd.xlane.f32.xlu0 %v1219
      %v1221 = vpop.xlane.xlu0 %1220
      %vm1222 = vcmask 7168
      %1223 = vst.msk [vmem:[%s163] sm:$0xff] %vm1222, %v1216
      %vm1224 = vcmask 15368
      %1225 = vst.msk [vmem:[%s163] sm:$0xff] %vm1224, %v1221
      %p1226 = scmp.lt.s32.totalorder %s17, 1
      %s1227 = scalar_select %p1226, %s17, 1
      %p1228 = scmp.lt.s32.totalorder %s18, 1
      %s1229 = scalar_select %p1228, %s18, 1
      %s1230 = smul.addr %s1227, 2
      %s1231 = sadd.s32 %s1229, %s1230
      %s1232 = smul.addr %s1231, 8
      %s1233 = scalar_lea.vmem %s2, %s1232
      // Predicated region
      $region29: #{conv2d_batchnorm.2} parent=27 // pred_check
        %p1234 = pneg %p92
      $region30: #{conv2d_batchnorm.2} parent=27 // pred_check_branch
        %1236 = sbr.rel (%p1234) target = $region32
      $region31: #{conv2d_batchnorm.2} parent=27 // pred_region
        _
      $region32: #{conv2d_batchnorm.2} parent=27 // pred_fallthru
        _
    $region28: #{conv2d_batchnorm.2} parent=5 // pred_fallthru
      _
    %p1237 = scmp.le.s32.totalorder 2, %s8
    // Predicated region
    $region33: #{conv2d_batchnorm.2} parent=5 // pred_check
      %p1238 = pneg %p1237
    $region34: #{conv2d_batchnorm.2} parent=5 // pred_check_branch
      %1240 = sbr.rel (%p1238) target = $region36
    $region35: #{conv2d_batchnorm.2} parent=5 // pred_region
      %s1241 = ssub.s32 %s8, 2
      // Predicated region
      $region37: #{conv2d_batchnorm.2} parent=35 // pred_check
        %p1242 = pneg %p98
      $region38: #{conv2d_batchnorm.2} parent=35 // pred_check_branch
        %1244 = sbr.rel (%p1242) target = $region40
      $region39: #{conv2d_batchnorm.2} parent=35 // pred_region
        %p1245 = scmp.lt.s32.totalorder %s19, 1
        %s1246 = scalar_select %p1245, %s19, 1
        %p1247 = scmp.lt.s32.totalorder %s20, 1
        %s1248 = scalar_select %p1247, %s20, 1
        %s1249 = smul.addr %s1246, 2
        %s1250 = sadd.s32 %s1248, %s1249
        %s1251 = smul.addr %s1250, 8
        %s1252 = scalar_lea.vmem %s2, %s1251
      $region40: #{conv2d_batchnorm.2} parent=35 // pred_fallthru
        _
    $region36: #{conv2d_batchnorm.2} parent=5 // pred_fallthru
      _
  $region6: #{conv2d_batchnorm.2} parent=0 // loop_footer
    %s12 = sadd.s32 1, %s8
  $region7: #{conv2d_batchnorm.2} parent=0 // loop_footer_branch
    %7 = sbr.rel target = $region3
  $region8: #{conv2d_batchnorm.2} parent=0 // loop_exit
    _

// kernel: conv2d_batchnorm.3
$region0: #{conv2d_batchnorm.3}
  #allocation0 [shape = 'u32[]', space=smem, size = 0x4, offset = 0x4, fixed_abs, tag = 'smem constant byte address 0x4 - core index']
  #allocation1 [shape = 'u32[144,128]{1,0:T(1,128)}', space=vmem, size = 0x12000, scoped, tag = 'internal scratch']
  #allocation2 [shape = 'f32[10,18,4]{2,1,0:T(8,128)}', space=vmem, size = 0x1e000, scoped, tag = 'scratch operand']
  #allocation3 [shape = 'f32[128,36]{1,0:T(8,128)}', space=vmem, size = 0x10000, scoped, tag = 'scratch operand']
  %s0 = inlined_call_operand.vmem [shape: bf16[2,18,18,4], index: 0, kind: input, shape index: {}]
  %s1 = inlined_call_operand.vmem [shape: bf16[8,36], index: 1, kind: input, shape index: {}]
  %s2 = inlined_call_operand.vmem [shape: f32[2,8,1], index: 2, kind: input, shape index: {}]
  %s3 = inlined_call_operand.vmem [shape: f32[2,8,256], index: 3, kind: output, shape index: {}]
  %s4 = sld [smem:[#allocation0]]
  $region45: #{conv2d_batchnorm.3} parent=0
    _
  %s6 = ssub.s32 1, %s4
  %s7 = scalar_select 0, %s6, %s4
  loop: start=0, step=1, limit=6
  $region2: #{conv2d_batchnorm.3} parent=0 // loop_pre_header
    _
  $region3: #{conv2d_batchnorm.3} parent=0 // loop_header
    %s9 = sphi 0, %s13
    %p10 = scmp.ge.s32.totalorder %s9, 6
    %s16 = sphi 0, %s28
    %s17 = sphi 0, %s24
    %s18 = sphi 0, %s16
    %s19 = sphi 0, %s17
    %s20 = sphi 0, %s18
    %s21 = sphi 0, %s19
    %s31 = sphi 0, %s33
    %s34 = sphi 0, %s31
    %s35 = sphi 0, %s34
    %s51 = sphi 0, %s35
    %s55 = sphi 0, %s55
    %s57 = sphi 0, %s55
    %s58 = sphi 0, %s57
    %s72 = sphi 0, %s58
    %s76 = sphi 0, %s76
    %s78 = sphi 0, %s76
    %s79 = sphi 0, %s78
    %s93 = sphi 0, %s79
    %s101 = sphi 0, %s103
    %s104 = sphi 0, %s101
    %s105 = sphi 0, %s104
    %s121 = sphi 0, %s105
  $region4: #{conv2d_batchnorm.3} parent=0 // loop_header_branch
    %12 = sbr.rel (%p10) target = $region8
  $region5: #{conv2d_batchnorm.3} parent=0 // loop_body
    %s14 = ssub.s32 %s9, 1
    %s15 = ssub.s32 %s9, 2
    %s22 = sadd.s32 1, %s17
    %p23 = scmp.ge.s32.totalorder %s22, 2
    %s24 = scalar_select %p23, 0, %s22
    %s25 = sadd.s32 1, %s16
    %s26 = scalar_select %p23, %s25, %s16
    %p27 = scmp.ge.s32.totalorder %s26, 2
    %s28 = scalar_select %p27, 0, %s26
    %s29 = ssub.s32 %s16, %s28
    %p30 = scmp.eq.s32.totalorder %s29, 0
    %s32 = sadd.s32 %s31, 1
    %s33 = scalar_select %p30, %s31, %s32
    %p36 = pneg %p30
    %p37 = scmp.eq.s32.totalorder %s9, 3
    %p38 = por %p36, %p37
    %p39 = scmp.ne.s32.totalorder %s31, %s34
    %p40 = scmp.eq.s32.totalorder %s9, 0
    %p41 = por %p39, %p40
    %p42 = scmp.ne.s32.totalorder %s31, %s34
    %p43 = scmp.eq.s32.totalorder %s14, 3
    %p44 = por %p42, %p43
    %p45 = scmp.ne.s32.totalorder %s34, %s35
    %p46 = scmp.eq.s32.totalorder %s14, 0
    %p47 = por %p45, %p46
    %p48 = scmp.ne.s32.totalorder %s34, %s35
    %p49 = scmp.eq.s32.totalorder %s15, 3
    %p50 = por %p48, %p49
    %p52 = scmp.ne.s32.totalorder %s35, %s51
    %p53 = scmp.eq.s32.totalorder %s15, 0
    %p54 = por %p52, %p53
    %s56 = sadd.s32 %s55, 1
    %p59 = scmp.eq.s32.totalorder %s9, 3
    %p60 = scmp.ne.s32.totalorder %s55, %s57
    %p61 = scmp.eq.s32.totalorder %s9, 0
    %p62 = por %p60, %p61
    %p63 = scmp.ne.s32.totalorder %s55, %s57
    %p64 = scmp.eq.s32.totalorder %s14, 3
    %p65 = por %p63, %p64
    %p66 = scmp.ne.s32.totalorder %s57, %s58
    %p67 = scmp.eq.s32.totalorder %s14, 0
    %p68 = por %p66, %p67
    %p69 = scmp.ne.s32.totalorder %s57, %s58
    %p70 = scmp.eq.s32.totalorder %s15, 3
    %p71 = por %p69, %p70
    %p73 = scmp.ne.s32.totalorder %s58, %s72
    %p74 = scmp.eq.s32.totalorder %s15, 0
    %p75 = por %p73, %p74
    %s77 = sadd.s32 %s76, 1
    %p80 = scmp.eq.s32.totalorder %s9, 3
    %p81 = scmp.ne.s32.totalorder %s76, %s78
    %p82 = scmp.eq.s32.totalorder %s9, 0
    %p83 = por %p81, %p82
    %p84 = scmp.ne.s32.totalorder %s76, %s78
    %p85 = scmp.eq.s32.totalorder %s14, 3
    %p86 = por %p84, %p85
    %p87 = scmp.ne.s32.totalorder %s78, %s79
    %p88 = scmp.eq.s32.totalorder %s14, 0
    %p89 = por %p87, %p88
    %p90 = scmp.ne.s32.totalorder %s78, %s79
    %p91 = scmp.eq.s32.totalorder %s15, 3
    %p92 = por %p90, %p91
    %p94 = scmp.ne.s32.totalorder %s79, %s93
    %p95 = scmp.eq.s32.totalorder %s15, 0
    %p96 = por %p94, %p95
    %s97 = ssub.s32 %s16, %s28
    %s98 = ssub.s32 %s17, %s24
    %s99 = sor.u32 %s97, %s98
    %p100 = scmp.eq.s32.totalorder %s99, 0
    %s102 = sadd.s32 %s101, 1
    %s103 = scalar_select %p100, %s101, %s102
    %p106 = pneg %p100
    %p107 = scmp.eq.s32.totalorder %s9, 3
    %p108 = por %p106, %p107
    %p109 = scmp.ne.s32.totalorder %s101, %s104
    %p110 = scmp.eq.s32.totalorder %s9, 0
    %p111 = por %p109, %p110
    %p112 = scmp.ne.s32.totalorder %s101, %s104
    %p113 = scmp.eq.s32.totalorder %s14, 3
    %p114 = por %p112, %p113
    %p115 = scmp.ne.s32.totalorder %s104, %s105
    %p116 = scmp.eq.s32.totalorder %s14, 0
    %p117 = por %p115, %p116
    %p118 = scmp.ne.s32.totalorder %s104, %s105
    %p119 = scmp.eq.s32.totalorder %s15, 3
    %p120 = por %p118, %p119
    %p122 = scmp.ne.s32.totalorder %s105, %s121
    %p123 = scmp.eq.s32.totalorder %s15, 0
    %p124 = por %p122, %p123
    %p125 = scmp.le.s32.totalorder 1, %s9
    %p126 = scmp.lt.s32.totalorder %s9, 5
    %p127 = pnand %p125, %p126
    %p128 = pneg %p127
    // Predicated region
    $region9: #{conv2d_batchnorm.3} parent=5 // pred_check
      _
    $region10: #{conv2d_batchnorm.3} parent=5 // pred_check_branch
      %130 = sbr.rel (%p127) target = $region12
    $region11: #{conv2d_batchnorm.3} parent=5 // pred_region
      %s131 = ssub.s32 %s9, 1
      // Predicated region
      $region13: #{conv2d_batchnorm.3} parent=11 // pred_check
        %p132 = pneg %p68
      $region14: #{conv2d_batchnorm.3} parent=11 // pred_check_branch
        %134 = sbr.rel (%p132) target = $region16
      $region15: #{conv2d_batchnorm.3} parent=11 // pred_region
        _
      $region16: #{conv2d_batchnorm.3} parent=11 // pred_fallthru
        _
      // Predicated region
      $region17: #{conv2d_batchnorm.3} parent=11 // pred_check
        %p135 = pneg %p89
      $region18: #{conv2d_batchnorm.3} parent=11 // pred_check_branch
        %137 = sbr.rel (%p135) target = $region20
      $region19: #{conv2d_batchnorm.3} parent=11 // pred_region
        _
      $region20: #{conv2d_batchnorm.3} parent=11 // pred_fallthru
        _
    $region12: #{conv2d_batchnorm.3} parent=5 // pred_fallthru
      _
    %p138 = scmp.lt.s32.totalorder %s9, 4
    // Predicated region
    $region21: #{conv2d_batchnorm.3} parent=5 // pred_check
      %p139 = pneg %p138
    $region22: #{conv2d_batchnorm.3} parent=5 // pred_check_branch
      %141 = sbr.rel (%p139) target = $region24
    $region23: #{conv2d_batchnorm.3} parent=5 // pred_region
      // Predicated region
      $region25: #{conv2d_batchnorm.3} parent=23 // pred_check
        %p142 = pneg %p41
      $region26: #{conv2d_batchnorm.3} parent=23 // pred_check_branch
        %144 = sbr.rel (%p142) target = $region28
      $region27: #{conv2d_batchnorm.3} parent=23 // pred_region
        %p145 = scmp.lt.s32.totalorder %s16, 1
        %s146 = scalar_select %p145, %s16, 1
        %s147 = smul.addr %s146, 54
        %s148 = smul.addr %s147, 4
        %s149 = scalar_lea.vmem %s0, %s148
      $region28: #{conv2d_batchnorm.3} parent=23 // pred_fallthru
        _
    $region24: #{conv2d_batchnorm.3} parent=5 // pred_fallthru
      _
    %p150 = scmp.le.s32.totalorder 1, %s9
    %p151 = scmp.lt.s32.totalorder %s9, 5
    %p152 = pnand %p150, %p151
    %p153 = pneg %p152
    // Predicated region
    $region29: #{conv2d_batchnorm.3} parent=5 // pred_check
      _
    $region30: #{conv2d_batchnorm.3} parent=5 // pred_check_branch
      %155 = sbr.rel (%p152) target = $region32
    $region31: #{conv2d_batchnorm.3} parent=5 // pred_region
      %s156 = ssub.s32 %s9, 1
      %p157 = scmp.lt.s32.totalorder %s18, 1
      %s158 = scalar_select %p157, %s18, 1
      %s159 = smul.addr %s158, 54
      %s160 = smul.addr %s159, 4
      %s161 = scalar_lea.vmem %s0, %s160
      %p162 = pneg %p47
      %p163 = pneg %p44
      %p164 = pneg %p68
      %p165 = pneg %p65
      %p166 = pneg %p89
      %p167 = pneg %p86
      %p168 = pneg %p117
      %p169 = pneg %p114
      %p170 = scmp.lt.s32.totalorder %s18, 1
      %s171 = scalar_select %p170, %s18, 1
      %p172 = scmp.lt.s32.totalorder %s19, 1
      %s173 = scalar_select %p172, %s19, 1
      %s174 = smul.addr %s171, 2
      %s175 = sadd.s32 %s173, %s174
      %s176 = smul.addr %s175, 8
      %s177 = scalar_lea.vmem %s3, %s176
      %p178 = scmp.lt.s32.totalorder %s18, 1
      %s179 = scalar_select %p178, %s18, 1
      %s180 = smul.addr %s179, 54
      %s181 = smul.addr %s180, 4
      %s182 = scalar_lea.vmem %s0, %s181
      %p183 = scmp.lt.s32.totalorder %s18, 1
      %s184 = scalar_select %p183, %s18, 1
      %p185 = scmp.lt.s32.totalorder %s19, 1
      %s186 = scalar_select %p185, %s19, 1
      %s187 = smul.addr %s184, 2
      %s188 = sadd.s32 %s186, %s187
      %s189 = smul.addr %s188, 8
      %s190 = scalar_lea.vmem %s3, %s189
      %s191 = smul.u32 %s19, 8
      %s192 = smul.u32 %s191, 3
      %s193 = smul.addr %s192, 4
      %s194 = scalar_lea.vmem %s182, %s193
      %v195 = vld [vmem:[%s194] sm:$0xf]
      %v196 = vld [vmem:[%s194 + $0x4] sm:$0xf]
      %v197 = vld [vmem:[%s194 + $0x8] sm:$0x1]
      %v198 = vld [vmem:[%s194 + $0xc] sm:$0xf]
      %v199 = vld [vmem:[%s194 + $0x10] sm:$0xf]
      %v200 = vld [vmem:[%s194 + $0x14] sm:$0x1]
      %v201 = vld [vmem:[%s194 + $0x18] sm:$0xf]
      %v202 = vld [vmem:[%s194 + $0x1c] sm:$0xf]
      %v203 = vld [vmem:[%s194 + $0x20] sm:$0x1]
      %v204 = vld [vmem:[%s194 + $0x24] sm:$0xf]
      %v205 = vld [vmem:[%s194 + $0x28] sm:$0xf]
      %v206 = vld [vmem:[%s194 + $0x2c] sm:$0x1]
      %v207 = vld [vmem:[%s194 + $0x30] sm:$0xf]
      %v208 = vld [vmem:[%s194 + $0x34] sm:$0xf]
      %v209 = vld [vmem:[%s194 + $0x38] sm:$0x1]
      %v210 = vld [vmem:[%s194 + $0x3c] sm:$0xf]
      %v211 = vld [vmem:[%s194 + $0x40] sm:$0xf]
      %v212 = vld [vmem:[%s194 + $0x44] sm:$0x1]
      %v213 = vld [vmem:[%s194 + $0x48] sm:$0xf]
      %v214 = vld [vmem:[%s194 + $0x4c] sm:$0xf]
      %v215 = vld [vmem:[%s194 + $0x50] sm:$0x1]
      %v216 = vld [vmem:[%s194 + $0x54] sm:$0xf]
      %v217 = vld [vmem:[%s194 + $0x58] sm:$0xf]
      %v218 = vld [vmem:[%s194 + $0x5c] sm:$0x1]
      %v219 = vunpack.c.l.bf16 %v195
      %v220 = vunpack.c.l.bf16 %v196
      %v221 = vunpack.c.l.bf16 %v197
      %v222 = vunpack.c.l.bf16 %v198
      %v223 = vunpack.c.l.bf16 %v199
      %v224 = vunpack.c.l.bf16 %v200
      %v225 = vunpack.c.l.bf16 %v201
      %v226 = vunpack.c.l.bf16 %v202
      %v227 = vunpack.c.l.bf16 %v203
      %v228 = vunpack.c.l.bf16 %v204
      %v229 = vunpack.c.l.bf16 %v205
      %v230 = vunpack.c.l.bf16 %v206
      %v231 = vunpack.c.l.bf16 %v207
      %v232 = vunpack.c.l.bf16 %v208
      %v233 = vunpack.c.l.bf16 %v209
      %v234 = vunpack.c.l.bf16 %v210
      %v235 = vunpack.c.l.bf16 %v211
      %v236 = vunpack.c.l.bf16 %v212
      %v237 = vunpack.c.l.bf16 %v213
      %v238 = vunpack.c.l.bf16 %v214
      %v239 = vunpack.c.l.bf16 %v215
      %v240 = vunpack.c.l.bf16 %v216
      %v241 = vunpack.c.l.bf16 %v217
      %v242 = vunpack.c.l.bf16 %v218
      %vm243 = vcmask 31744
      %244 = vst.msk [vmem:[#allocation2] sm:$0xff] %vm243, %v219
      %245 = vst.msk [vmem:[#allocation2 + $0x8] sm:$0xff] %vm243, %v220
      %vm246 = vcmask 25600
      %247 = vst.msk [vmem:[#allocation2 + $0x10] sm:$0x3] %vm246, %v221
      %248 = vst.msk [vmem:[#allocation2 + $0x18] sm:$0xff] %vm243, %v222
      %249 = vst.msk [vmem:[#allocation2 + $0x20] sm:$0xff] %vm243, %v223
      %250 = vst.msk [vmem:[#allocation2 + $0x28] sm:$0x3] %vm246, %v224
      %251 = vst.msk [vmem:[#allocation2 + $0x30] sm:$0xff] %vm243, %v225
      %252 = vst.msk [vmem:[#allocation2 + $0x38] sm:$0xff] %vm243, %v226
      %253 = vst.msk [vmem:[#allocation2 + $0x40] sm:$0x3] %vm246, %v227
      %254 = vst.msk [vmem:[#allocation2 + $0x48] sm:$0xff] %vm243, %v228
      %255 = vst.msk [vmem:[#allocation2 + $0x50] sm:$0xff] %vm243, %v229
      %256 = vst.msk [vmem:[#allocation2 + $0x58] sm:$0x3] %vm246, %v230
      %257 = vst.msk [vmem:[#allocation2 + $0x60] sm:$0xff] %vm243, %v231
      %258 = vst.msk [vmem:[#allocation2 + $0x68] sm:$0xff] %vm243, %v232
      %259 = vst.msk [vmem:[#allocation2 + $0x70] sm:$0x3] %vm246, %v233
      %260 = vst.msk [vmem:[#allocation2 + $0x78] sm:$0xff] %vm243, %v234
      %261 = vst.msk [vmem:[#allocation2 + $0x80] sm:$0xff] %vm243, %v235
      %262 = vst.msk [vmem:[#allocation2 + $0x88] sm:$0x3] %vm246, %v236
      %263 = vst.msk [vmem:[#allocation2 + $0x90] sm:$0xff] %vm243, %v237
      %264 = vst.msk [vmem:[#allocation2 + $0x98] sm:$0xff] %vm243, %v238
      %265 = vst.msk [vmem:[#allocation2 + $0xa0] sm:$0x3] %vm246, %v239
      %266 = vst.msk [vmem:[#allocation2 + $0xa8] sm:$0xff] %vm243, %v240
      %267 = vst.msk [vmem:[#allocation2 + $0xb0] sm:$0xff] %vm243, %v241
      %268 = vst.msk [vmem:[#allocation2 + $0xb8] sm:$0x3] %vm246, %v242
      %s269 = sadd.s32 %s191, 8
      %s270 = smul.u32 %s269, 3
      %s271 = smul.addr %s270, 4
      %s272 = scalar_lea.vmem %s182, %s271
      %v273 = vld [vmem:[%s272] sm:$0xf]
      %v274 = vld [vmem:[%s272 + $0x4] sm:$0xf]
      %v275 = vld [vmem:[%s272 + $0x8] sm:$0x1]
      %v276 = vld [vmem:[%s272 + $0xc] sm:$0xf]
      %v277 = vld [vmem:[%s272 + $0x10] sm:$0xf]
      %v278 = vld [vmem:[%s272 + $0x14] sm:$0x1]
      %v279 = vunpack.c.l.bf16 %v273
      %v280 = vunpack.c.l.bf16 %v274
      %v281 = vunpack.c.l.bf16 %v275
      %v282 = vunpack.c.l.bf16 %v276
      %v283 = vunpack.c.l.bf16 %v277
      %v284 = vunpack.c.l.bf16 %v278
      %s285 = scalar_lea.vmem [#allocation2], 192
      %286 = vst.msk [vmem:[%s285] sm:$0xff] %vm243, %v279
      %287 = vst.msk [vmem:[%s285 + $0x8] sm:$0xff] %vm243, %v280
      %288 = vst.msk [vmem:[%s285 + $0x10] sm:$0x3] %vm246, %v281
      %289 = vst.msk [vmem:[%s285 + $0x18] sm:$0xff] %vm243, %v282
      %290 = vst.msk [vmem:[%s285 + $0x20] sm:$0xff] %vm243, %v283
      %291 = vst.msk [vmem:[%s285 + $0x28] sm:$0x3] %vm246, %v284
      %v292 = vld [vmem:[#allocation2] sm:$0xff]
      %v293 = vld [vmem:[#allocation2 + $0x8] sm:$0xff]
      %v294 = vld [vmem:[#allocation2 + $0x18] sm:$0xff]
      %v295 = vld [vmem:[#allocation2 + $0x20] sm:$0xff]
      %v296 = vld [vmem:[#allocation2 + $0x30] sm:$0xff]
      %v297 = vld [vmem:[#allocation2 + $0x38] sm:$0xff]
      %v298 = vld [vmem:[#allocation2 + $0x48] sm:$0xff]
      %v299 = vld [vmem:[#allocation2 + $0x50] sm:$0xff]
      %v300 = vld [vmem:[#allocation2 + $0x60] sm:$0xff]
      %v301 = vld [vmem:[#allocation2 + $0x68] sm:$0xff]
      %v302 = vld [vmem:[#allocation2 + $0x78] sm:$0xff]
      %v303 = vld [vmem:[#allocation2 + $0x80] sm:$0xff]
      %v304 = vld [vmem:[#allocation2 + $0x90] sm:$0xff]
      %v305 = vld [vmem:[#allocation2 + $0x98] sm:$0xff]
      %v306 = vld [vmem:[#allocation2 + $0xa8] sm:$0xff]
      %v307 = vld [vmem:[#allocation2 + $0xb0] sm:$0xff]
      %308 = vst.msk [vmem:[#allocation3] sm:$0xff] %vm243, %v292
      %309 = vst.msk [vmem:[#allocation3 + $0x8] sm:$0xff] %vm243, %v293
      %310 = vst.msk [vmem:[#allocation3 + $0x10] sm:$0xff] %vm243, %v294
      %311 = vst.msk [vmem:[#allocation3 + $0x18] sm:$0xff] %vm243, %v295
      %312 = vst.msk [vmem:[#allocation3 + $0x20] sm:$0xff] %vm243, %v296
      %313 = vst.msk [vmem:[#allocation3 + $0x28] sm:$0xff] %vm243, %v297
      %314 = vst.msk [vmem:[#allocation3 + $0x30] sm:$0xff] %vm243, %v298
      %315 = vst.msk [vmem:[#allocation3 + $0x38] sm:$0xff] %vm243, %v299
      %316 = vst.msk [vmem:[#allocation3 + $0x40] sm:$0xff] %vm243, %v300
      %317 = vst.msk [vmem:[#allocation3 + $0x48] sm:$0xff] %vm243, %v301
      %318 = vst.msk [vmem:[#allocation3 + $0x50] sm:$0xff] %vm243, %v302
      %319 = vst.msk [vmem:[#allocation3 + $0x58] sm:$0xff] %vm243, %v303
      %320 = vst.msk [vmem:[#allocation3 + $0x60] sm:$0xff] %vm243, %v304
      %321 = vst.msk [vmem:[#allocation3 + $0x68] sm:$0xff] %vm243, %v305
      %322 = vst.msk [vmem:[#allocation3 + $0x70] sm:$0xff] %vm243, %v306
      %323 = vst.msk [vmem:[#allocation3 + $0x78] sm:$0xff] %vm243, %v307
      %v324 = vld [vmem:[#allocation2 + $0x1] sm:$0xff]
      %v325 = vld [vmem:[#allocation2 + $0x9] sm:$0xff]
      %v326 = vld [vmem:[#allocation2 + $0x19] sm:$0xff]
      %v327 = vld [vmem:[#allocation2 + $0x21] sm:$0xff]
      %v328 = vld [vmem:[#allocation2 + $0x31] sm:$0xff]
      %v329 = vld [vmem:[#allocation2 + $0x39] sm:$0xff]
      %v330 = vld [vmem:[#allocation2 + $0x49] sm:$0xff]
      %v331 = vld [vmem:[#allocation2 + $0x51] sm:$0xff]
      %v332 = vld [vmem:[#allocation2 + $0x61] sm:$0xff]
      %v333 = vld [vmem:[#allocation2 + $0x69] sm:$0xff]
      %v334 = vld [vmem:[#allocation2 + $0x79] sm:$0xff]
      %v335 = vld [vmem:[#allocation2 + $0x81] sm:$0xff]
      %v336 = vld [vmem:[#allocation2 + $0x91] sm:$0xff]
      %v337 = vld [vmem:[#allocation2 + $0x99] sm:$0xff]
      %v338 = vld [vmem:[#allocation2 + $0xa9] sm:$0xff]
      %v339 = vld [vmem:[#allocation2 + $0xb1] sm:$0xff]
      %356 = vrot.lane.b32.xlu0 %v324, 4
      %v357 = vpop.permute.xlu0 %356
      %358 = vrot.lane.b32.xlu0 %v325, 4
      %v359 = vpop.permute.xlu0 %358
      %360 = vrot.lane.b32.xlu0 %v326, 4
      %v361 = vpop.permute.xlu0 %360
      %362 = vrot.lane.b32.xlu0 %v327, 4
      %v363 = vpop.permute.xlu0 %362
      %364 = vrot.lane.b32.xlu0 %v328, 4
      %v365 = vpop.permute.xlu0 %364
      %366 = vrot.lane.b32.xlu0 %v329, 4
      %v367 = vpop.permute.xlu0 %366
      %368 = vrot.lane.b32.xlu0 %v330, 4
      %v369 = vpop.permute.xlu0 %368
      %370 = vrot.lane.b32.xlu0 %v331, 4
      %v371 = vpop.permute.xlu0 %370
      %372 = vrot.lane.b32.xlu0 %v332, 4
      %v373 = vpop.permute.xlu0 %372
      %374 = vrot.lane.b32.xlu0 %v333, 4
      %v375 = vpop.permute.xlu0 %374
      %376 = vrot.lane.b32.xlu0 %v334, 4
      %v377 = vpop.permute.xlu0 %376
      %378 = vrot.lane.b32.xlu0 %v335, 4
      %v379 = vpop.permute.xlu0 %378
      %380 = vrot.lane.b32.xlu0 %v336, 4
      %v381 = vpop.permute.xlu0 %380
      %382 = vrot.lane.b32.xlu0 %v337, 4
      %v383 = vpop.permute.xlu0 %382
      %384 = vrot.lane.b32.xlu0 %v338, 4
      %v385 = vpop.permute.xlu0 %384
      %386 = vrot.lane.b32.xlu0 %v339, 4
      %v387 = vpop.permute.xlu0 %386
      %vm404 = vcmask 64544
      %405 = vst.msk [vmem:[#allocation3] sm:$0xff] %vm404, %v357
      %406 = vst.msk [vmem:[#allocation3 + $0x8] sm:$0xff] %vm404, %v359
      %407 = vst.msk [vmem:[#allocation3 + $0x10] sm:$0xff] %vm404, %v361
      %408 = vst.msk [vmem:[#allocation3 + $0x18] sm:$0xff] %vm404, %v363
      %409 = vst.msk [vmem:[#allocation3 + $0x20] sm:$0xff] %vm404, %v365
      %410 = vst.msk [vmem:[#allocation3 + $0x28] sm:$0xff] %vm404, %v367
      %411 = vst.msk [vmem:[#allocation3 + $0x30] sm:$0xff] %vm404, %v369
      %412 = vst.msk [vmem:[#allocation3 + $0x38] sm:$0xff] %vm404, %v371
      %413 = vst.msk [vmem:[#allocation3 + $0x40] sm:$0xff] %vm404, %v373
      %414 = vst.msk [vmem:[#allocation3 + $0x48] sm:$0xff] %vm404, %v375
      %415 = vst.msk [vmem:[#allocation3 + $0x50] sm:$0xff] %vm404, %v377
      %416 = vst.msk [vmem:[#allocation3 + $0x58] sm:$0xff] %vm404, %v379
      %417 = vst.msk [vmem:[#allocation3 + $0x60] sm:$0xff] %vm404, %v381
      %418 = vst.msk [vmem:[#allocation3 + $0x68] sm:$0xff] %vm404, %v383
      %419 = vst.msk [vmem:[#allocation3 + $0x70] sm:$0xff] %vm404, %v385
      %420 = vst.msk [vmem:[#allocation3 + $0x78] sm:$0xff] %vm404, %v387
      %v421 = vld [vmem:[#allocation2 + $0x2] sm:$0xff]
      %v422 = vld [vmem:[#allocation2 + $0xa] sm:$0xff]
      %v423 = vld [vmem:[#allocation2 + $0x1a] sm:$0xff]
      %v424 = vld [vmem:[#allocation2 + $0x22] sm:$0xff]
      %v425 = vld [vmem:[#allocation2 + $0x32] sm:$0xff]
      %v426 = vld [vmem:[#allocation2 + $0x3a] sm:$0xff]
      %v427 = vld [vmem:[#allocation2 + $0x4a] sm:$0xff]
      %v428 = vld [vmem:[#allocation2 + $0x52] sm:$0xff]
      %v429 = vld [vmem:[#allocation2 + $0x62] sm:$0xff]
      %v430 = vld [vmem:[#allocation2 + $0x6a] sm:$0xff]
      %v431 = vld [vmem:[#allocation2 + $0x7a] sm:$0xff]
      %v432 = vld [vmem:[#allocation2 + $0x82] sm:$0xff]
      %v433 = vld [vmem:[#allocation2 + $0x92] sm:$0xff]
      %v434 = vld [vmem:[#allocation2 + $0x9a] sm:$0xff]
      %v435 = vld [vmem:[#allocation2 + $0xaa] sm:$0xff]
      %v436 = vld [vmem:[#allocation2 + $0xb2] sm:$0xff]
      %453 = vrot.lane.b32.xlu0 %v421, 8
      %v454 = vpop.permute.xlu0 %453
      %455 = vrot.lane.b32.xlu0 %v422, 8
      %v456 = vpop.permute.xlu0 %455
      %457 = vrot.lane.b32.xlu0 %v423, 8
      %v458 = vpop.permute.xlu0 %457
      %459 = vrot.lane.b32.xlu0 %v424, 8
      %v460 = vpop.permute.xlu0 %459
      %461 = vrot.lane.b32.xlu0 %v425, 8
      %v462 = vpop.permute.xlu0 %461
      %463 = vrot.lane.b32.xlu0 %v426, 8
      %v464 = vpop.permute.xlu0 %463
      %465 = vrot.lane.b32.xlu0 %v427, 8
      %v466 = vpop.permute.xlu0 %465
      %467 = vrot.lane.b32.xlu0 %v428, 8
      %v468 = vpop.permute.xlu0 %467
      %469 = vrot.lane.b32.xlu0 %v429, 8
      %v470 = vpop.permute.xlu0 %469
      %471 = vrot.lane.b32.xlu0 %v430, 8
      %v472 = vpop.permute.xlu0 %471
      %473 = vrot.lane.b32.xlu0 %v431, 8
      %v474 = vpop.permute.xlu0 %473
      %475 = vrot.lane.b32.xlu0 %v432, 8
      %v476 = vpop.permute.xlu0 %475
      %477 = vrot.lane.b32.xlu0 %v433, 8
      %v478 = vpop.permute.xlu0 %477
      %479 = vrot.lane.b32.xlu0 %v434, 8
      %v480 = vpop.permute.xlu0 %479
      %481 = vrot.lane.b32.xlu0 %v435, 8
      %v482 = vpop.permute.xlu0 %481
      %483 = vrot.lane.b32.xlu0 %v436, 8
      %v484 = vpop.permute.xlu0 %483
      %vm501 = vcmask 97344
      %502 = vst.msk [vmem:[#allocation3] sm:$0xff] %vm501, %v454
      %503 = vst.msk [vmem:[#allocation3 + $0x8] sm:$0xff] %vm501, %v456
      %504 = vst.msk [vmem:[#allocation3 + $0x10] sm:$0xff] %vm501, %v458
      %505 = vst.msk [vmem:[#allocation3 + $0x18] sm:$0xff] %vm501, %v460
      %506 = vst.msk [vmem:[#allocation3 + $0x20] sm:$0xff] %vm501, %v462
      %507 = vst.msk [vmem:[#allocation3 + $0x28] sm:$0xff] %vm501, %v464
      %508 = vst.msk [vmem:[#allocation3 + $0x30] sm:$0xff] %vm501, %v466
      %509 = vst.msk [vmem:[#allocation3 + $0x38] sm:$0xff] %vm501, %v468
      %510 = vst.msk [vmem:[#allocation3 + $0x40] sm:$0xff] %vm501, %v470
      %511 = vst.msk [vmem:[#allocation3 + $0x48] sm:$0xff] %vm501, %v472
      %512 = vst.msk [vmem:[#allocation3 + $0x50] sm:$0xff] %vm501, %v474
      %513 = vst.msk [vmem:[#allocation3 + $0x58] sm:$0xff] %vm501, %v476
      %514 = vst.msk [vmem:[#allocation3 + $0x60] sm:$0xff] %vm501, %v478
      %515 = vst.msk [vmem:[#allocation3 + $0x68] sm:$0xff] %vm501, %v480
      %516 = vst.msk [vmem:[#allocation3 + $0x70] sm:$0xff] %vm501, %v482
      %517 = vst.msk [vmem:[#allocation3 + $0x78] sm:$0xff] %vm501, %v484
      %s518 = scalar_lea.vmem [#allocation2], 24
      %v519 = vld [vmem:[%s518] sm:$0xff]
      %v520 = vld [vmem:[%s518 + $0x8] sm:$0xff]
      %v521 = vld [vmem:[%s518 + $0x18] sm:$0xff]
      %v522 = vld [vmem:[%s518 + $0x20] sm:$0xff]
      %v523 = vld [vmem:[%s518 + $0x30] sm:$0xff]
      %v524 = vld [vmem:[%s518 + $0x38] sm:$0xff]
      %v525 = vld [vmem:[%s518 + $0x48] sm:$0xff]
      %v526 = vld [vmem:[%s518 + $0x50] sm:$0xff]
      %v527 = vld [vmem:[%s518 + $0x60] sm:$0xff]
      %v528 = vld [vmem:[%s518 + $0x68] sm:$0xff]
      %v529 = vld [vmem:[%s518 + $0x78] sm:$0xff]
      %v530 = vld [vmem:[%s518 + $0x80] sm:$0xff]
      %v531 = vld [vmem:[%s518 + $0x90] sm:$0xff]
      %v532 = vld [vmem:[%s518 + $0x98] sm:$0xff]
      %v533 = vld [vmem:[%s518 + $0xa8] sm:$0xff]
      %v534 = vld [vmem:[%s518 + $0xb0] sm:$0xff]
      %551 = vrot.lane.b32.xlu0 %v519, 12
      %v552 = vpop.permute.xlu0 %551
      %553 = vrot.lane.b32.xlu0 %v520, 12
      %v554 = vpop.permute.xlu0 %553
      %555 = vrot.lane.b32.xlu0 %v521, 12
      %v556 = vpop.permute.xlu0 %555
      %557 = vrot.lane.b32.xlu0 %v522, 12
      %v558 = vpop.permute.xlu0 %557
      %559 = vrot.lane.b32.xlu0 %v523, 12
      %v560 = vpop.permute.xlu0 %559
      %561 = vrot.lane.b32.xlu0 %v524, 12
      %v562 = vpop.permute.xlu0 %561
      %563 = vrot.lane.b32.xlu0 %v525, 12
      %v564 = vpop.permute.xlu0 %563
      %565 = vrot.lane.b32.xlu0 %v526, 12
      %v566 = vpop.permute.xlu0 %565
      %567 = vrot.lane.b32.xlu0 %v527, 12
      %v568 = vpop.permute.xlu0 %567
      %569 = vrot.lane.b32.xlu0 %v528, 12
      %v570 = vpop.permute.xlu0 %569
      %571 = vrot.lane.b32.xlu0 %v529, 12
      %v572 = vpop.permute.xlu0 %571
      %573 = vrot.lane.b32.xlu0 %v530, 12
      %v574 = vpop.permute.xlu0 %573
      %575 = vrot.lane.b32.xlu0 %v531, 12
      %v576 = vpop.permute.xlu0 %575
      %577 = vrot.lane.b32.xlu0 %v532, 12
      %v578 = vpop.permute.xlu0 %577
      %579 = vrot.lane.b32.xlu0 %v533, 12
      %v580 = vpop.permute.xlu0 %579
      %581 = vrot.lane.b32.xlu0 %v534, 12
      %v582 = vpop.permute.xlu0 %581
      %vm599 = vcmask 130144
      %600 = vst.msk [vmem:[#allocation3] sm:$0xff] %vm599, %v552
      %601 = vst.msk [vmem:[#allocation3 + $0x8] sm:$0xff] %vm599, %v554
      %602 = vst.msk [vmem:[#allocation3 + $0x10] sm:$0xff] %vm599, %v556
      %603 = vst.msk [vmem:[#allocation3 + $0x18] sm:$0xff] %vm599, %v558
      %604 = vst.msk [vmem:[#allocation3 + $0x20] sm:$0xff] %vm599, %v560
      %605 = vst.msk [vmem:[#allocation3 + $0x28] sm:$0xff] %vm599, %v562
      %606 = vst.msk [vmem:[#allocation3 + $0x30] sm:$0xff] %vm599, %v564
      %607 = vst.msk [vmem:[#allocation3 + $0x38] sm:$0xff] %vm599, %v566
      %608 = vst.msk [vmem:[#allocation3 + $0x40] sm:$0xff] %vm599, %v568
      %609 = vst.msk [vmem:[#allocation3 + $0x48] sm:$0xff] %vm599, %v570
      %610 = vst.msk [vmem:[#allocation3 + $0x50] sm:$0xff] %vm599, %v572
      %611 = vst.msk [vmem:[#allocation3 + $0x58] sm:$0xff] %vm599, %v574
      %612 = vst.msk [vmem:[#allocation3 + $0x60] sm:$0xff] %vm599, %v576
      %613 = vst.msk [vmem:[#allocation3 + $0x68] sm:$0xff] %vm599, %v578
      %614 = vst.msk [vmem:[#allocation3 + $0x70] sm:$0xff] %vm599, %v580
      %615 = vst.msk [vmem:[#allocation3 + $0x78] sm:$0xff] %vm599, %v582
      %v616 = vld [vmem:[%s518 + $0x1] sm:$0xff]
      %v617 = vld [vmem:[%s518 + $0x9] sm:$0xff]
      %v618 = vld [vmem:[%s518 + $0x19] sm:$0xff]
      %v619 = vld [vmem:[%s518 + $0x21] sm:$0xff]
      %v620 = vld [vmem:[%s518 + $0x31] sm:$0xff]
      %v621 = vld [vmem:[%s518 + $0x39] sm:$0xff]
      %v622 = vld [vmem:[%s518 + $0x49] sm:$0xff]
      %v623 = vld [vmem:[%s518 + $0x51] sm:$0xff]
      %v624 = vld [vmem:[%s518 + $0x61] sm:$0xff]
      %v625 = vld [vmem:[%s518 + $0x69] sm:$0xff]
      %v626 = vld [vmem:[%s518 + $0x79] sm:$0xff]
      %v627 = vld [vmem:[%s518 + $0x81] sm:$0xff]
      %v628 = vld [vmem:[%s518 + $0x91] sm:$0xff]
      %v629 = vld [vmem:[%s518 + $0x99] sm:$0xff]
      %v630 = vld [vmem:[%s518 + $0xa9] sm:$0xff]
      %v631 = vld [vmem:[%s518 + $0xb1] sm:$0xff]
      %648 = vrot.lane.b32.xlu0 %v616, 16
      %v649 = vpop.permute.xlu0 %648
      %650 = vrot.lane.b32.xlu0 %v617, 16
      %v651 = vpop.permute.xlu0 %650
      %652 = vrot.lane.b32.xlu0 %v618, 16
      %v653 = vpop.permute.xlu0 %652
      %654 = vrot.lane.b32.xlu0 %v619, 16
      %v655 = vpop.permute.xlu0 %654
      %656 = vrot.lane.b32.xlu0 %v620, 16
      %v657 = vpop.permute.xlu0 %656
      %658 = vrot.lane.b32.xlu0 %v621, 16
      %v659 = vpop.permute.xlu0 %658
      %660 = vrot.lane.b32.xlu0 %v622, 16
      %v661 = vpop.permute.xlu0 %660
      %662 = vrot.lane.b32.xlu0 %v623, 16
      %v663 = vpop.permute.xlu0 %662
      %664 = vrot.lane.b32.xlu0 %v624, 16
      %v665 = vpop.permute.xlu0 %664
      %666 = vrot.lane.b32.xlu0 %v625, 16
      %v667 = vpop.permute.xlu0 %666
      %668 = vrot.lane.b32.xlu0 %v626, 16
      %v669 = vpop.permute.xlu0 %668
      %670 = vrot.lane.b32.xlu0 %v627, 16
      %v671 = vpop.permute.xlu0 %670
      %672 = vrot.lane.b32.xlu0 %v628, 16
      %v673 = vpop.permute.xlu0 %672
      %674 = vrot.lane.b32.xlu0 %v629, 16
      %v675 = vpop.permute.xlu0 %674
      %676 = vrot.lane.b32.xlu0 %v630, 16
      %v677 = vpop.permute.xlu0 %676
      %678 = vrot.lane.b32.xlu0 %v631, 16
      %v679 = vpop.permute.xlu0 %678
      %vm696 = vcmask 162944
      %697 = vst.msk [vmem:[#allocation3] sm:$0xff] %vm696, %v649
      %698 = vst.msk [vmem:[#allocation3 + $0x8] sm:$0xff] %vm696, %v651
      %699 = vst.msk [vmem:[#allocation3 + $0x10] sm:$0xff] %vm696, %v653
      %700 = vst.msk [vmem:[#allocation3 + $0x18] sm:$0xff] %vm696, %v655
      %701 = vst.msk [vmem:[#allocation3 + $0x20] sm:$0xff] %vm696, %v657
      %702 = vst.msk [vmem:[#allocation3 + $0x28] sm:$0xff] %vm696, %v659
      %703 = vst.msk [vmem:[#allocation3 + $0x30] sm:$0xff] %vm696, %v661
      %704 = vst.msk [vmem:[#allocation3 + $0x38] sm:$0xff] %vm696, %v663
      %705 = vst.msk [vmem:[#allocation3 + $0x40] sm:$0xff] %vm696, %v665
      %706 = vst.msk [vmem:[#allocation3 + $0x48] sm:$0xff] %vm696, %v667
      %707 = vst.msk [vmem:[#allocation3 + $0x50] sm:$0xff] %vm696, %v669
      %708 = vst.msk [vmem:[#allocation3 + $0x58] sm:$0xff] %vm696, %v671
      %709 = vst.msk [vmem:[#allocation3 + $0x60] sm:$0xff] %vm696, %v673
      %710 = vst.msk [vmem:[#allocation3 + $0x68] sm:$0xff] %vm696, %v675
      %711 = vst.msk [vmem:[#allocation3 + $0x70] sm:$0xff] %vm696, %v677
      %712 = vst.msk [vmem:[#allocation3 + $0x78] sm:$0xff] %vm696, %v679
      %v713 = vld [vmem:[%s518 + $0x2] sm:$0xff]
      %v714 = vld [vmem:[%s518 + $0xa] sm:$0xff]
      %v715 = vld [vmem:[%s518 + $0x1a] sm:$0xff]
      %v716 = vld [vmem:[%s518 + $0x22] sm:$0xff]
      %v717 = vld [vmem:[%s518 + $0x32] sm:$0xff]
      %v718 = vld [vmem:[%s518 + $0x3a] sm:$0xff]
      %v719 = vld [vmem:[%s518 + $0x4a] sm:$0xff]
      %v720 = vld [vmem:[%s518 + $0x52] sm:$0xff]
      %v721 = vld [vmem:[%s518 + $0x62] sm:$0xff]
      %v722 = vld [vmem:[%s518 + $0x6a] sm:$0xff]
      %v723 = vld [vmem:[%s518 + $0x7a] sm:$0xff]
      %v724 = vld [vmem:[%s518 + $0x82] sm:$0xff]
      %v725 = vld [vmem:[%s518 + $0x92] sm:$0xff]
      %v726 = vld [vmem:[%s518 + $0x9a] sm:$0xff]
      %v727 = vld [vmem:[%s518 + $0xaa] sm:$0xff]
      %v728 = vld [vmem:[%s518 + $0xb2] sm:$0xff]
      %745 = vrot.lane.b32.xlu0 %v713, 20
      %v746 = vpop.permute.xlu0 %745
      %747 = vrot.lane.b32.xlu0 %v714, 20
      %v748 = vpop.permute.xlu0 %747
      %749 = vrot.lane.b32.xlu0 %v715, 20
      %v750 = vpop.permute.xlu0 %749
      %751 = vrot.lane.b32.xlu0 %v716, 20
      %v752 = vpop.permute.xlu0 %751
      %753 = vrot.lane.b32.xlu0 %v717, 20
      %v754 = vpop.permute.xlu0 %753
      %755 = vrot.lane.b32.xlu0 %v718, 20
      %v756 = vpop.permute.xlu0 %755
      %757 = vrot.lane.b32.xlu0 %v719, 20
      %v758 = vpop.permute.xlu0 %757
      %759 = vrot.lane.b32.xlu0 %v720, 20
      %v760 = vpop.permute.xlu0 %759
      %761 = vrot.lane.b32.xlu0 %v721, 20
      %v762 = vpop.permute.xlu0 %761
      %763 = vrot.lane.b32.xlu0 %v722, 20
      %v764 = vpop.permute.xlu0 %763
      %765 = vrot.lane.b32.xlu0 %v723, 20
      %v766 = vpop.permute.xlu0 %765
      %767 = vrot.lane.b32.xlu0 %v724, 20
      %v768 = vpop.permute.xlu0 %767
      %769 = vrot.lane.b32.xlu0 %v725, 20
      %v770 = vpop.permute.xlu0 %769
      %771 = vrot.lane.b32.xlu0 %v726, 20
      %v772 = vpop.permute.xlu0 %771
      %773 = vrot.lane.b32.xlu0 %v727, 20
      %v774 = vpop.permute.xlu0 %773
      %775 = vrot.lane.b32.xlu0 %v728, 20
      %v776 = vpop.permute.xlu0 %775
      %vm793 = vcmask 195744
      %794 = vst.msk [vmem:[#allocation3] sm:$0xff] %vm793, %v746
      %795 = vst.msk [vmem:[#allocation3 + $0x8] sm:$0xff] %vm793, %v748
      %796 = vst.msk [vmem:[#allocation3 + $0x10] sm:$0xff] %vm793, %v750
      %797 = vst.msk [vmem:[#allocation3 + $0x18] sm:$0xff] %vm793, %v752
      %798 = vst.msk [vmem:[#allocation3 + $0x20] sm:$0xff] %vm793, %v754
      %799 = vst.msk [vmem:[#allocation3 + $0x28] sm:$0xff] %vm793, %v756
      %800 = vst.msk [vmem:[#allocation3 + $0x30] sm:$0xff] %vm793, %v758
      %801 = vst.msk [vmem:[#allocation3 + $0x38] sm:$0xff] %vm793, %v760
      %802 = vst.msk [vmem:[#allocation3 + $0x40] sm:$0xff] %vm793, %v762
      %803 = vst.msk [vmem:[#allocation3 + $0x48] sm:$0xff] %vm793, %v764
      %804 = vst.msk [vmem:[#allocation3 + $0x50] sm:$0xff] %vm793, %v766
      %805 = vst.msk [vmem:[#allocation3 + $0x58] sm:$0xff] %vm793, %v768
      %806 = vst.msk [vmem:[#allocation3 + $0x60] sm:$0xff] %vm793, %v770
      %807 = vst.msk [vmem:[#allocation3 + $0x68] sm:$0xff] %vm793, %v772
      %808 = vst.msk [vmem:[#allocation3 + $0x70] sm:$0xff] %vm793, %v774
      %809 = vst.msk [vmem:[#allocation3 + $0x78] sm:$0xff] %vm793, %v776
      %s810 = scalar_lea.vmem [#allocation2], 48
      %v811 = vld [vmem:[%s810] sm:$0xff]
      %v812 = vld [vmem:[%s810 + $0x8] sm:$0xff]
      %v813 = vld [vmem:[%s810 + $0x18] sm:$0xff]
      %v814 = vld [vmem:[%s810 + $0x20] sm:$0xff]
      %v815 = vld [vmem:[%s810 + $0x30] sm:$0xff]
      %v816 = vld [vmem:[%s810 + $0x38] sm:$0xff]
      %v817 = vld [vmem:[%s810 + $0x48] sm:$0xff]
      %v818 = vld [vmem:[%s810 + $0x50] sm:$0xff]
      %v819 = vld [vmem:[%s810 + $0x60] sm:$0xff]
      %v820 = vld [vmem:[%s810 + $0x68] sm:$0xff]
      %v821 = vld [vmem:[%s810 + $0x78] sm:$0xff]
      %v822 = vld [vmem:[%s810 + $0x80] sm:$0xff]
      %v823 = vld [vmem:[%s810 + $0x90] sm:$0xff]
      %v824 = vld [vmem:[%s810 + $0x98] sm:$0xff]
      %v825 = vld [vmem:[%s810 + $0xa8] sm:$0xff]
      %v826 = vld [vmem:[%s810 + $0xb0] sm:$0xff]
      %843 = vrot.lane.b32.xlu0 %v811, 24
      %v844 = vpop.permute.xlu0 %843
      %845 = vrot.lane.b32.xlu0 %v812, 24
      %v846 = vpop.permute.xlu0 %845
      %847 = vrot.lane.b32.xlu0 %v813, 24
      %v848 = vpop.permute.xlu0 %847
      %849 = vrot.lane.b32.xlu0 %v814, 24
      %v850 = vpop.permute.xlu0 %849
      %851 = vrot.lane.b32.xlu0 %v815, 24
      %v852 = vpop.permute.xlu0 %851
      %853 = vrot.lane.b32.xlu0 %v816, 24
      %v854 = vpop.permute.xlu0 %853
      %855 = vrot.lane.b32.xlu0 %v817, 24
      %v856 = vpop.permute.xlu0 %855
      %857 = vrot.lane.b32.xlu0 %v818, 24
      %v858 = vpop.permute.xlu0 %857
      %859 = vrot.lane.b32.xlu0 %v819, 24
      %v860 = vpop.permute.xlu0 %859
      %861 = vrot.lane.b32.xlu0 %v820, 24
      %v862 = vpop.permute.xlu0 %861
      %863 = vrot.lane.b32.xlu0 %v821, 24
      %v864 = vpop.permute.xlu0 %863
      %865 = vrot.lane.b32.xlu0 %v822, 24
      %v866 = vpop.permute.xlu0 %865
      %867 = vrot.lane.b32.xlu0 %v823, 24
      %v868 = vpop.permute.xlu0 %867
      %869 = vrot.lane.b32.xlu0 %v824, 24
      %v870 = vpop.permute.xlu0 %869
      %871 = vrot.lane.b32.xlu0 %v825, 24
      %v872 = vpop.permute.xlu0 %871
      %873 = vrot.lane.b32.xlu0 %v826, 24
      %v874 = vpop.permute.xlu0 %873
      %vm891 = vcmask 228544
      %892 = vst.msk [vmem:[#allocation3] sm:$0xff] %vm891, %v844
      %893 = vst.msk [vmem:[#allocation3 + $0x8] sm:$0xff] %vm891, %v846
      %894 = vst.msk [vmem:[#allocation3 + $0x10] sm:$0xff] %vm891, %v848
      %895 = vst.msk [vmem:[#allocation3 + $0x18] sm:$0xff] %vm891, %v850
      %896 = vst.msk [vmem:[#allocation3 + $0x20] sm:$0xff] %vm891, %v852
      %897 = vst.msk [vmem:[#allocation3 + $0x28] sm:$0xff] %vm891, %v854
      %898 = vst.msk [vmem:[#allocation3 + $0x30] sm:$0xff] %vm891, %v856
      %899 = vst.msk [vmem:[#allocation3 + $0x38] sm:$0xff] %vm891, %v858
      %900 = vst.msk [vmem:[#allocation3 + $0x40] sm:$0xff] %vm891, %v860
      %901 = vst.msk [vmem:[#allocation3 + $0x48] sm:$0xff] %vm891, %v862
      %902 = vst.msk [vmem:[#allocation3 + $0x50] sm:$0xff] %vm891, %v864
      %903 = vst.msk [vmem:[#allocation3 + $0x58] sm:$0xff] %vm891, %v866
      %904 = vst.msk [vmem:[#allocation3 + $0x60] sm:$0xff] %vm891, %v868
      %905 = vst.msk [vmem:[#allocation3 + $0x68] sm:$0xff] %vm891, %v870
      %906 = vst.msk [vmem:[#allocation3 + $0x70] sm:$0xff] %vm891, %v872
      %907 = vst.msk [vmem:[#allocation3 + $0x78] sm:$0xff] %vm891, %v874
      %v908 = vld [vmem:[%s810 + $0x1] sm:$0xff]
      %v909 = vld [vmem:[%s810 + $0x9] sm:$0xff]
      %v910 = vld [vmem:[%s810 + $0x19] sm:$0xff]
      %v911 = vld [vmem:[%s810 + $0x21] sm:$0xff]
      %v912 = vld [vmem:[%s810 + $0x31] sm:$0xff]
      %v913 = vld [vmem:[%s810 + $0x39] sm:$0xff]
      %v914 = vld [vmem:[%s810 + $0x49] sm:$0xff]
      %v915 = vld [vmem:[%s810 + $0x51] sm:$0xff]
      %v916 = vld [vmem:[%s810 + $0x61] sm:$0xff]
      %v917 = vld [vmem:[%s810 + $0x69] sm:$0xff]
      %v918 = vld [vmem:[%s810 + $0x79] sm:$0xff]
      %v919 = vld [vmem:[%s810 + $0x81] sm:$0xff]
      %v920 = vld [vmem:[%s810 + $0x91] sm:$0xff]
      %v921 = vld [vmem:[%s810 + $0x99] sm:$0xff]
      %v922 = vld [vmem:[%s810 + $0xa9] sm:$0xff]
      %v923 = vld [vmem:[%s810 + $0xb1] sm:$0xff]
      %940 = vrot.lane.b32.xlu0 %v908, 28
      %v941 = vpop.permute.xlu0 %940
      %942 = vrot.lane.b32.xlu0 %v909, 28
      %v943 = vpop.permute.xlu0 %942
      %944 = vrot.lane.b32.xlu0 %v910, 28
      %v945 = vpop.permute.xlu0 %944
      %946 = vrot.lane.b32.xlu0 %v911, 28
      %v947 = vpop.permute.xlu0 %946
      %948 = vrot.lane.b32.xlu0 %v912, 28
      %v949 = vpop.permute.xlu0 %948
      %950 = vrot.lane.b32.xlu0 %v913, 28
      %v951 = vpop.permute.xlu0 %950
      %952 = vrot.lane.b32.xlu0 %v914, 28
      %v953 = vpop.permute.xlu0 %952
      %954 = vrot.lane.b32.xlu0 %v915, 28
      %v955 = vpop.permute.xlu0 %954
      %956 = vrot.lane.b32.xlu0 %v916, 28
      %v957 = vpop.permute.xlu0 %956
      %958 = vrot.lane.b32.xlu0 %v917, 28
      %v959 = vpop.permute.xlu0 %958
      %960 = vrot.lane.b32.xlu0 %v918, 28
      %v961 = vpop.permute.xlu0 %960
      %962 = vrot.lane.b32.xlu0 %v919, 28
      %v963 = vpop.permute.xlu0 %962
      %964 = vrot.lane.b32.xlu0 %v920, 28
      %v965 = vpop.permute.xlu0 %964
      %966 = vrot.lane.b32.xlu0 %v921, 28
      %v967 = vpop.permute.xlu0 %966
      %968 = vrot.lane.b32.xlu0 %v922, 28
      %v969 = vpop.permute.xlu0 %968
      %970 = vrot.lane.b32.xlu0 %v923, 28
      %v971 = vpop.permute.xlu0 %970
      %vm988 = vcmask 261344
      %989 = vst.msk [vmem:[#allocation3] sm:$0xff] %vm988, %v941
      %990 = vst.msk [vmem:[#allocation3 + $0x8] sm:$0xff] %vm988, %v943
      %991 = vst.msk [vmem:[#allocation3 + $0x10] sm:$0xff] %vm988, %v945
      %992 = vst.msk [vmem:[#allocation3 + $0x18] sm:$0xff] %vm988, %v947
      %993 = vst.msk [vmem:[#allocation3 + $0x20] sm:$0xff] %vm988, %v949
      %994 = vst.msk [vmem:[#allocation3 + $0x28] sm:$0xff] %vm988, %v951
      %995 = vst.msk [vmem:[#allocation3 + $0x30] sm:$0xff] %vm988, %v953
      %996 = vst.msk [vmem:[#allocation3 + $0x38] sm:$0xff] %vm988, %v955
      %997 = vst.msk [vmem:[#allocation3 + $0x40] sm:$0xff] %vm988, %v957
      %998 = vst.msk [vmem:[#allocation3 + $0x48] sm:$0xff] %vm988, %v959
      %999 = vst.msk [vmem:[#allocation3 + $0x50] sm:$0xff] %vm988, %v961
      %1000 = vst.msk [vmem:[#allocation3 + $0x58] sm:$0xff] %vm988, %v963
      %1001 = vst.msk [vmem:[#allocation3 + $0x60] sm:$0xff] %vm988, %v965
      %1002 = vst.msk [vmem:[#allocation3 + $0x68] sm:$0xff] %vm988, %v967
      %1003 = vst.msk [vmem:[#allocation3 + $0x70] sm:$0xff] %vm988, %v969
      %1004 = vst.msk [vmem:[#allocation3 + $0x78] sm:$0xff] %vm988, %v971
      %v1005 = vld [vmem:[%s810 + $0x2] sm:$0xff]
      %v1006 = vld [vmem:[%s810 + $0xa] sm:$0xff]
      %v1007 = vld [vmem:[%s810 + $0x1a] sm:$0xff]
      %v1008 = vld [vmem:[%s810 + $0x22] sm:$0xff]
      %v1009 = vld [vmem:[%s810 + $0x32] sm:$0xff]
      %v1010 = vld [vmem:[%s810 + $0x3a] sm:$0xff]
      %v1011 = vld [vmem:[%s810 + $0x4a] sm:$0xff]
      %v1012 = vld [vmem:[%s810 + $0x52] sm:$0xff]
      %v1013 = vld [vmem:[%s810 + $0x62] sm:$0xff]
      %v1014 = vld [vmem:[%s810 + $0x6a] sm:$0xff]
      %v1015 = vld [vmem:[%s810 + $0x7a] sm:$0xff]
      %v1016 = vld [vmem:[%s810 + $0x82] sm:$0xff]
      %v1017 = vld [vmem:[%s810 + $0x92] sm:$0xff]
      %v1018 = vld [vmem:[%s810 + $0x9a] sm:$0xff]
      %v1019 = vld [vmem:[%s810 + $0xaa] sm:$0xff]
      %v1020 = vld [vmem:[%s810 + $0xb2] sm:$0xff]
      %1037 = vrot.lane.b32.xlu0 %v1005, 32
      %v1038 = vpop.permute.xlu0 %1037
      %1039 = vrot.lane.b32.xlu0 %v1006, 32
      %v1040 = vpop.permute.xlu0 %1039
      %1041 = vrot.lane.b32.xlu0 %v1007, 32
      %v1042 = vpop.permute.xlu0 %1041
      %1043 = vrot.lane.b32.xlu0 %v1008, 32
      %v1044 = vpop.permute.xlu0 %1043
      %1045 = vrot.lane.b32.xlu0 %v1009, 32
      %v1046 = vpop.permute.xlu0 %1045
      %1047 = vrot.lane.b32.xlu0 %v1010, 32
      %v1048 = vpop.permute.xlu0 %1047
      %1049 = vrot.lane.b32.xlu0 %v1011, 32
      %v1050 = vpop.permute.xlu0 %1049
      %1051 = vrot.lane.b32.xlu0 %v1012, 32
      %v1052 = vpop.permute.xlu0 %1051
      %1053 = vrot.lane.b32.xlu0 %v1013, 32
      %v1054 = vpop.permute.xlu0 %1053
      %1055 = vrot.lane.b32.xlu0 %v1014, 32
      %v1056 = vpop.permute.xlu0 %1055
      %1057 = vrot.lane.b32.xlu0 %v1015, 32
      %v1058 = vpop.permute.xlu0 %1057
      %1059 = vrot.lane.b32.xlu0 %v1016, 32
      %v1060 = vpop.permute.xlu0 %1059
      %1061 = vrot.lane.b32.xlu0 %v1017, 32
      %v1062 = vpop.permute.xlu0 %1061
      %1063 = vrot.lane.b32.xlu0 %v1018, 32
      %v1064 = vpop.permute.xlu0 %1063
      %1065 = vrot.lane.b32.xlu0 %v1019, 32
      %v1066 = vpop.permute.xlu0 %1065
      %1067 = vrot.lane.b32.xlu0 %v1020, 32
      %v1068 = vpop.permute.xlu0 %1067
      %vm1085 = vcmask 294144
      %1086 = vst.msk [vmem:[#allocation3] sm:$0xff] %vm1085, %v1038
      %1087 = vst.msk [vmem:[#allocation3 + $0x8] sm:$0xff] %vm1085, %v1040
      %1088 = vst.msk [vmem:[#allocation3 + $0x10] sm:$0xff] %vm1085, %v1042
      %1089 = vst.msk [vmem:[#allocation3 + $0x18] sm:$0xff] %vm1085, %v1044
      %1090 = vst.msk [vmem:[#allocation3 + $0x20] sm:$0xff] %vm1085, %v1046
      %1091 = vst.msk [vmem:[#allocation3 + $0x28] sm:$0xff] %vm1085, %v1048
      %1092 = vst.msk [vmem:[#allocation3 + $0x30] sm:$0xff] %vm1085, %v1050
      %1093 = vst.msk [vmem:[#allocation3 + $0x38] sm:$0xff] %vm1085, %v1052
      %1094 = vst.msk [vmem:[#allocation3 + $0x40] sm:$0xff] %vm1085, %v1054
      %1095 = vst.msk [vmem:[#allocation3 + $0x48] sm:$0xff] %vm1085, %v1056
      %1096 = vst.msk [vmem:[#allocation3 + $0x50] sm:$0xff] %vm1085, %v1058
      %1097 = vst.msk [vmem:[#allocation3 + $0x58] sm:$0xff] %vm1085, %v1060
      %1098 = vst.msk [vmem:[#allocation3 + $0x60] sm:$0xff] %vm1085, %v1062
      %1099 = vst.msk [vmem:[#allocation3 + $0x68] sm:$0xff] %vm1085, %v1064
      %1100 = vst.msk [vmem:[#allocation3 + $0x70] sm:$0xff] %vm1085, %v1066
      %1101 = vst.msk [vmem:[#allocation3 + $0x78] sm:$0xff] %vm1085, %v1068
      %v1102 = vld [vmem:[%s1] sm:$0xf]
      %v1103 = vunpack.c.l.bf16 %v1102
      %v1104 = vld [vmem:[#allocation3] sm:$0xff]
      %v1105 = vld [vmem:[#allocation3 + $0x8] sm:$0xff]
      %v1106 = vld [vmem:[#allocation3 + $0x10] sm:$0xff]
      %v1107 = vld [vmem:[#allocation3 + $0x18] sm:$0xff]
      %v1108 = vld [vmem:[#allocation3 + $0x20] sm:$0xff]
      %v1109 = vld [vmem:[#allocation3 + $0x28] sm:$0xff]
      %v1110 = vld [vmem:[#allocation3 + $0x30] sm:$0xff]
      %v1111 = vld [vmem:[#allocation3 + $0x38] sm:$0xff]
      %v1112 = vld [vmem:[#allocation3 + $0x40] sm:$0xff]
      %v1113 = vld [vmem:[#allocation3 + $0x48] sm:$0xff]
      %v1114 = vld [vmem:[#allocation3 + $0x50] sm:$0xff]
      %v1115 = vld [vmem:[#allocation3 + $0x58] sm:$0xff]
      %v1116 = vld [vmem:[#allocation3 + $0x60] sm:$0xff]
      %v1117 = vld [vmem:[#allocation3 + $0x68] sm:$0xff]
      %v1118 = vld [vmem:[#allocation3 + $0x70] sm:$0xff]
      %v1119 = vld [vmem:[#allocation3 + $0x78] sm:$0xff]
      %vm1120 = vcmask 293888
      %v1122 = vsel %vm1120, %v1103, 0
      %v1125 = vsel %vm1120, %v1104, 0
      %v1128 = vsel %vm1120, %v1105, 0
      %v1131 = vsel %vm1120, %v1106, 0
      %v1134 = vsel %vm1120, %v1107, 0
      %v1137 = vsel %vm1120, %v1108, 0
      %v1140 = vsel %vm1120, %v1109, 0
      %v1143 = vsel %vm1120, %v1110, 0
      %v1146 = vsel %vm1120, %v1111, 0
      %v1149 = vsel %vm1120, %v1112, 0
      %v1152 = vsel %vm1120, %v1113, 0
      %v1155 = vsel %vm1120, %v1114, 0
      %v1158 = vsel %vm1120, %v1115, 0
      %v1161 = vsel %vm1120, %v1116, 0
      %v1164 = vsel %vm1120, %v1117, 0
      %v1167 = vsel %vm1120, %v1118, 0
      %v1170 = vsel %vm1120, %v1119, 0
      %1172 = vmatprep.subr.mxu0 0.0
      %1173 = vmatpush1.xpose.msra.mxu0 %v1125
      %1174 = vmatprep.subr.mxu0 0.0
      %1175 = vmatpush1.xpose.msra.mxu0 %v1128
      %1176 = vmatprep.subr.mxu0 0.0
      %1177 = vmatpush1.xpose.msra.mxu0 %v1131
      %1178 = vmatprep.subr.mxu0 0.0
      %1179 = vmatpush1.xpose.msra.mxu0 %v1134
      %1180 = vmatprep.subr.mxu0 0.0
      %1181 = vmatpush1.xpose.msra.mxu0 %v1137
      %1182 = vmatprep.subr.mxu0 0.0
      %1183 = vmatpush1.xpose.msra.mxu0 %v1140
      %1184 = vmatprep.subr.mxu0 0.0
      %1185 = vmatpush1.xpose.msra.mxu0 %v1143
      %1186 = vmatprep.subr.mxu0 0.0
      %1187 = vmatpush1.xpose.msra.mxu0 %v1146
      %1188 = vmatprep.subr.mxu0 0.0
      %1189 = vmatpush1.xpose.msra.mxu0 %v1149
      %1190 = vmatprep.subr.mxu0 0.0
      %1191 = vmatpush1.xpose.msra.mxu0 %v1152
      %1192 = vmatprep.subr.mxu0 0.0
      %1193 = vmatpush1.xpose.msra.mxu0 %v1155
      %1194 = vmatprep.subr.mxu0 0.0
      %1195 = vmatpush1.xpose.msra.mxu0 %v1158
      %1196 = vmatprep.subr.mxu0 0.0
      %1197 = vmatpush1.xpose.msra.mxu0 %v1161
      %1198 = vmatprep.subr.mxu0 0.0
      %1199 = vmatpush1.xpose.msra.mxu0 %v1164
      %1200 = vmatprep.subr.mxu0 0.0
      %1201 = vmatpush1.xpose.msra.mxu0 %v1167
      %1202 = vmatprep.subr.mxu0 0.0
      %1203 = vmatpush1.xpose.msra.mxu0 %v1170
      %1204 = vmatprep.subr.mxu0 0.0
      %1205 = vmatpush1.xpose.msra.mxu0 0.0
      %1206 = vmatprep.subr.mxu0 0.0
      %1207 = vmatpush1.xpose.msra.mxu0 0.0
      %1208 = vmatprep.subr.mxu0 0.0
      %1209 = vmatpush1.xpose.msra.mxu0 0.0
      %1210 = vmatprep.subr.mxu0 0.0
      %1211 = vmatpush1.xpose.msra.mxu0 0.0
      %1212 = vmatprep.subr.mxu0 0.0
      %1213 = vmatpush1.xpose.msra.mxu0 0.0
      %1214 = vmatprep.subr.mxu0 0.0
      %1215 = vmatpush1.xpose.msra.mxu0 0.0
      %1216 = vmatprep.subr.mxu0 0.0
      %1217 = vmatpush1.xpose.msra.mxu0 0.0
      %1218 = vmatprep.subr.mxu0 0.0
      %1219 = vmatpush1.xpose.msra.mxu0 0.0
      %1220 = vmatprep.subr.mxu0 0.0
      %1221 = vmatpush1.xpose.msra.mxu0 0.0
      %1222 = vmatprep.subr.mxu0 0.0
      %1223 = vmatpush1.xpose.msra.mxu0 0.0
      %1224 = vmatprep.subr.mxu0 0.0
      %1225 = vmatpush1.xpose.msra.mxu0 0.0
      %1226 = vmatprep.subr.mxu0 0.0
      %1227 = vmatpush1.xpose.msra.mxu0 0.0
      %1228 = vmatprep.subr.mxu0 0.0
      %1229 = vmatpush1.xpose.msra.mxu0 0.0
      %1230 = vmatprep.subr.mxu0 0.0
      %1231 = vmatpush1.xpose.msra.mxu0 0.0
      %1232 = vmatprep.subr.mxu0 0.0
      %1233 = vmatpush1.xpose.msra.mxu0 0.0
      %1234 = vmatprep.subr.mxu0 0.0
      %1235 = vmatpush1.xpose.msra.mxu0 0.0
      %1236 = vmatprep.mubr.f32.mxu0 0.0
      %1237 = vmatmul.mubr.f32.gmra.mrb[0].mxu0 %v1122
      %v1238 = vpop.f32.mrb[0].mxu0
      %v1239 = vadd.f32 0.0, %v1238
      %v1240 = vpop.f32.mrb[0].mxu0
      %1241 = vdwg.mxu0
      %v1242 = vld [vmem:[%s2] sm:$0xff]
      %1244 = vset.pattern.permute.xlu0 0
      %1245 = vperm.xlu0 %1244, %v1242
      %v1246 = vpop.permute.xlu0 %1245
      %v1248 = vmul.f32 %v1239, %v1246
      %s1249 = scalar_lea.vmem %s2, 8
      %v1250 = vld [vmem:[%s1249] sm:$0xff]
      %1252 = vset.pattern.permute.xlu0 0
      %1253 = vperm.xlu0 %1252, %v1250
      %v1254 = vpop.permute.xlu0 %1253
      %v1256 = vadd.f32 %v1248, %v1254
      %1257 = vst [vmem:[%s190] sm:$0xff] %v1256
      %p1258 = scmp.lt.s32.totalorder %s18, 1
      %s1259 = scalar_select %p1258, %s18, 1
      %p1260 = scmp.lt.s32.totalorder %s19, 1
      %s1261 = scalar_select %p1260, %s19, 1
      %s1262 = smul.addr %s1259, 2
      %s1263 = sadd.s32 %s1261, %s1262
      %s1264 = smul.addr %s1263, 8
      %s1265 = scalar_lea.vmem %s3, %s1264
      // Predicated region
      $region33: #{conv2d_batchnorm.3} parent=31 // pred_check
        %p1266 = pneg %p114
      $region34: #{conv2d_batchnorm.3} parent=31 // pred_check_branch
        %1268 = sbr.rel (%p1266) target = $region36
      $region35: #{conv2d_batchnorm.3} parent=31 // pred_region
        _
      $region36: #{conv2d_batchnorm.3} parent=31 // pred_fallthru
        _
    $region32: #{conv2d_batchnorm.3} parent=5 // pred_fallthru
      _
    %p1269 = scmp.le.s32.totalorder 2, %s9
    // Predicated region
    $region37: #{conv2d_batchnorm.3} parent=5 // pred_check
      %p1270 = pneg %p1269
    $region38: #{conv2d_batchnorm.3} parent=5 // pred_check_branch
      %1272 = sbr.rel (%p1270) target = $region40
    $region39: #{conv2d_batchnorm.3} parent=5 // pred_region
      %s1273 = ssub.s32 %s9, 2
      // Predicated region
      $region41: #{conv2d_batchnorm.3} parent=39 // pred_check
        %p1274 = pneg %p120
      $region42: #{conv2d_batchnorm.3} parent=39 // pred_check_branch
        %1276 = sbr.rel (%p1274) target = $region44
      $region43: #{conv2d_batchnorm.3} parent=39 // pred_region
        %p1277 = scmp.lt.s32.totalorder %s20, 1
        %s1278 = scalar_select %p1277, %s20, 1
        %p1279 = scmp.lt.s32.totalorder %s21, 1
        %s1280 = scalar_select %p1279, %s21, 1
        %s1281 = smul.addr %s1278, 2
        %s1282 = sadd.s32 %s1280, %s1281
        %s1283 = smul.addr %s1282, 8
        %s1284 = scalar_lea.vmem %s3, %s1283
      $region44: #{conv2d_batchnorm.3} parent=39 // pred_fallthru
        _
    $region40: #{conv2d_batchnorm.3} parent=5 // pred_fallthru
      _
  $region6: #{conv2d_batchnorm.3} parent=0 // loop_footer
    %s13 = sadd.s32 1, %s9
  $region7: #{conv2d_batchnorm.3} parent=0 // loop_footer_branch
    %8 = sbr.rel target = $region3
  $region8: #{conv2d_batchnorm.3} parent=0 // loop_exit
    _

</llo_original>
